<compile_context>
chip_gen: v7x
topology: tpu7x:2x2x1
jax: 0.10.0
libtpu: 0.0.40
codegen_flags: <defaults>
</compile_context>

<pallas_src>
import functools

import jax
import jax.numpy as jnp
import numpy as np
from jax.experimental import pallas as pl
from jax.experimental.pallas import tpu as pltpu


def _upsample2_matrix(s):
    """(2s, s) matrix M such that M @ y is the x2 bilinear (align_corners=False)
    upsample of y along its leading axis (edge clamping baked into the coefficients)."""
    m = np.zeros((2 * s, s), np.float32)
    for k in range(2 * s):
        src = min(max((k + 0.5) / 2.0 - 0.5, 0.0), float(s - 1))
        i0 = int(np.floor(src))
        i1 = min(i0 + 1, s - 1)
        f = src - i0
        m[k, i0] += 1.0 - f
        m[k, i1] += f
    return m


def _simple_upsample_kernel(wb_ref, u_ref, v_ref, x_ref, o_ref, xp_ref,
                            *, bb, cin, cout, h, w):
    """Per-batch-block body.

    wb_ref : VMEM (cin*9 + 1, cout*w)   lane-packed weight rows (BN folded), last row = bias
    u_ref  : VMEM (cout*w, cout*2w)     channel-block-diagonal column-upsample matrix
    v_ref  : VMEM (bb*2h, bb*h)         batch-block-diagonal row-upsample matrix
    x_ref  : VMEM (bb, cin, h, w)       unpadded input block
    o_ref  : VMEM (bb*2h, cout*2w)      lane-dense fused output slab
    xp_ref : VMEM (bb, cin, h+2, w+2)   zero-halo padded input scratch
    """
    # Refresh the zero-halo scratch for this batch block.  Done unconditionally (not
    # under pl.when(step == 0)) so correctness does not depend on how the "parallel"
    # grid axis is partitioned across TensorCores.
    xp_ref[...] = jnp.zeros_like(xp_ref)
    xp_ref[:, :, 1:h + 1, 1:w + 1] = x_ref[...].astype(jnp.float32)

    wb = wb_ref[...]                                     # read the weight table once
    bh = bb * h

    # cout-lane-packed accumulator, seeded with the folded bias row.
    acc = jnp.broadcast_to(wb[cin * 9], (bh, cout * w))

    # 3x3 zero-pad conv with BN scale pre-folded into the weights.  Each shifted tap is
    # read straight from the padded scratch, lane-tiled across the cout blocks,
    # multiplied by its precomputed weight row and consumed immediately: only `acc`
    # plus one tap are live, and every vmul/vadd covers cout*w lanes instead of w.
    for c in range(cin):
        for t in range(9):
            dy, dx = divmod(t, 3)
            tap = xp_ref[:, c:c + 1, dy:dy + h, dx:dx + w].reshape(bh, w)
            tap_t = jnp.concatenate([tap] * cout, axis=1)          # (bh, cout*w)
            acc = acc + tap_t * wb[c * 9 + t]

    y = jnp.maximum(acc, 0.0)                            # ReLU must stay before upsample

    # Bilinear x2 upsample as two wide MXU matmuls on the lane-packed slab:
    # batch-block-diagonal V on the left, channel-block-diagonal U on the right.
    # Parity interleave + edge clamping live in the constant matrices, so the result
    # lands directly in the lane-dense layout and is written with one unmasked store.
    z = jnp.dot(v_ref[...], y, preferred_element_type=jnp.float32)       # (bb*2h, cout*w)
    o_ref[...] = jnp.dot(z, u_ref[...],
                         preferred_element_type=jnp.float32).astype(o_ref.dtype)


def simple_upsample(x, conv_w, conv_b, bn_gamma, bn_beta, bn_mean, bn_var,
                    eps=1e-5, batch_block=None):
    """x: (N, Cin, H, W) f32 NCHW.  Returns (N, Cout, 2H, 2W) f32 NCHW."""
    n, cin, h, w = x.shape
    cout = conv_w.shape[0]

    # Fold eval-mode BN into the conv: w' = w * scale, b' = (b - mean) * scale + beta.
    scale = bn_gamma / jnp.sqrt(bn_var + eps)
    w_fold = conv_w.astype(jnp.float32) * scale[:, None, None, None]      # (cout,cin,3,3)
    b_fold = ((conv_b - bn_mean) * scale + bn_beta).astype(jnp.float32)   # (cout,)

    # Batch block per grid step: amortize fixed per-step overhead while keeping ~2
    # "parallel" steps (both v7x TensorCores fed); capped to keep per-step VMEM small.
    if batch_block is None:
        batch_block = max(1, min(8, pl.cdiv(n, 2)))
    bb = int(batch_block)
    n_steps = pl.cdiv(n, bb)
    n_pad = n_steps * bb

    x32 = x.astype(jnp.float32)
    if n_pad != n:
        x32 = jnp.concatenate(
            [x32, jnp.zeros((n_pad - n, cin, h, w), jnp.float32)], axis=0)

    # Lane-packed weight table (single small VMEM constant, copied once for the grid):
    # row (c*9 + dy*3 + dx) holds w_fold[o, c, dy, dx] repeated across each o-block of
    # width w; the last row is the folded bias.
    w_rows = jnp.repeat(
        jnp.transpose(w_fold, (1, 2, 3, 0)).reshape(cin * 9, cout), w, axis=1)
    b_row = jnp.repeat(b_fold, w)[None, :]
    wb = jnp.concatenate([w_rows, b_row], axis=0)                  # (cin*9+1, cout*w)

    # Constant x2 bilinear matrices: batch-block-diagonal V (row upsample) and
    # channel-block-diagonal U (column upsample), built once on the host.
    v_blk = jnp.asarray(np.kron(np.eye(bb, dtype=np.float32), _upsample2_matrix(h)))
    u_blk = jnp.asarray(np.kron(np.eye(cout, dtype=np.float32), _upsample2_matrix(w).T))

    kernel = functools.partial(_simple_upsample_kernel,
                               bb=bb, cin=cin, cout=cout, h=h, w=w)

    out2d = pl.pallas_call(
        kernel,
        out_shape=jax.ShapeDtypeStruct((n_steps * bb * 2 * h, cout * 2 * w), jnp.float32),
        grid_spec=pltpu.PrefetchScalarGridSpec(
            num_scalar_prefetch=0,
            grid=(n_steps,),
            in_specs=[
                pl.BlockSpec((cin * 9 + 1, cout * w), lambda i: (0, 0)),       # weights+bias
                pl.BlockSpec((cout * w, cout * 2 * w), lambda i: (0, 0)),      # U block-diag
                pl.BlockSpec((bb * 2 * h, bb * h), lambda i: (0, 0)),          # V block-diag
                pl.BlockSpec((bb, cin, h, w), lambda i: (i, 0, 0, 0)),         # x batch block
            ],
            out_specs=pl.BlockSpec((bb * 2 * h, cout * 2 * w), lambda i: (i, 0)),
            scratch_shapes=[pltpu.VMEM((bb, cin, h + 2, w + 2), jnp.float32)],
        ),
        # "parallel" over batch blocks: >=2 steps keeps both v7x TensorCores busy;
        # harmless on v5e/v6e.
        compiler_params=pltpu.CompilerParams(dimension_semantics=("parallel",)),
    )(wb, u_blk, v_blk, x32)

    # Layout plumbing only: lane-dense (bb*2h, cout*2w) slabs back to NCHW.
    out = out2d.reshape(n_pad, 2 * h, cout, 2 * w).transpose(0, 2, 1, 3)
    return out[:n]


def _reference(x, conv_w, conv_b, bn_gamma, bn_beta, bn_mean, bn_var, eps=1e-5):
    """Pure-JAX reference (independent gather-based bilinear)."""
    y = jax.lax.conv_general_dilated(
        x, conv_w, window_strides=(1, 1), padding=((1, 1), (1, 1)),
        dimension_numbers=("NCHW", "OIHW", "NCHW"))
    y = y + conv_b[None, :, None, None]
    y = (y - bn_mean[None, :, None, None]) / jnp.sqrt(bn_var[None, :, None, None] + eps)
    y = y * bn_gamma[None, :, None, None] + bn_beta[None, :, None, None]
    y = jnp.maximum(y, 0.0)

    def up2x(a, axis):
        size = a.shape[axis]
        dst = jnp.arange(2 * size)
        src = jnp.clip((dst + 0.5) / 2.0 - 0.5, 0.0, size - 1.0)
        i0 = jnp.floor(src).astype(jnp.int32)
        i1 = jnp.minimum(i0 + 1, size - 1)
        f = (src - i0).astype(a.dtype)
        shape = [1] * a.ndim
        shape[axis] = 2 * size
        f = f.reshape(shape)
        return jnp.take(a, i0, axis=axis) * (1 - f) + jnp.take(a, i1, axis=axis) * f

    return up2x(up2x(y, 2), 3)


if __name__ == "__main__":
    N, CIN, H, W = 2, 4, 16, 16
    CH_DOWNSAMPLE = 1
    COUT = CIN // CH_DOWNSAMPLE

    key = jax.random.PRNGKey(0)
    k = jax.random.split(key, 7)
    x = jax.random.normal(k[0], (N, CIN, H, W), jnp.float32)
    conv_w = 0.2 * jax.random.normal(k[1], (COUT, CIN, 3, 3), jnp.float32)
    conv_b = 0.1 * jax.random.normal(k[2], (COUT,), jnp.float32)
    bn_gamma = 1.0 + 0.1 * jax.random.normal(k[3], (COUT,), jnp.float32)
    bn_beta = 0.1 * jax.random.normal(k[4], (COUT,), jnp.float32)
    bn_mean = 0.1 * jax.random.normal(k[5], (COUT,), jnp.float32)
    bn_var = jax.random.uniform(k[6], (COUT,), jnp.float32, minval=0.5, maxval=1.5)

    out = simple_upsample(x, conv_w, conv_b, bn_gamma, bn_beta, bn_mean, bn_var)
    out = jax.block_until_ready(out)
    assert out.shape == (N, COUT, 2 * H, 2 * W), out.shape

    ref = _reference(x, conv_w, conv_b, bn_gamma, bn_beta, bn_mean, bn_var)
    max_err = float(jnp.max(jnp.abs(out - ref)))
    assert max_err < 1e-4, f"max abs error {max_err}"

    print("KERNEL_OK")
</pallas_src>

<mosaic_0001>
module attributes {stable_mosaic.version = 11 : i64} {
  func.func @_simple_upsample_kernel(%arg0: i32, %arg1: memref<37x64xf32, #tpu.memory_space<vmem>>, %arg2: memref<64x128xf32, #tpu.memory_space<vmem>>, %arg3: memref<32x16xf32, #tpu.memory_space<vmem>>, %arg4: memref<1x4x16x16xf32, #tpu.memory_space<vmem>>, %arg5: memref<32x128xf32, #tpu.memory_space<vmem>>, %arg6: memref<1x4x18x18xf32, #tpu.memory_space<vmem>>) attributes {dimension_semantics = [#tpu.dimension_semantics<parallel>], iteration_bounds = array<i64: 2>, scalar_prefetch = 0 : i64, scratch_operands = 1 : i64, tpu.core_type = #tpu.core_type<tc>, window_params = [{pipeline_mode = #tpu.pipeline_mode<synchronous>, transform_indices = @transform_0, window_bounds = array<i64: 37, 64>}, {pipeline_mode = #tpu.pipeline_mode<synchronous>, transform_indices = @transform_1, window_bounds = array<i64: 64, 128>}, {pipeline_mode = #tpu.pipeline_mode<synchronous>, transform_indices = @transform_2, window_bounds = array<i64: 32, 16>}, {transform_indices = @transform_3, window_bounds = array<i64: 1, 4, 16, 16>}, {transform_indices = @transform_4, window_bounds = array<i64: 32, 128>}]} {
    %cst = arith.constant 0.000000e+00 : f32
    %0 = vector.broadcast %cst : f32 to vector<1x4x18x18xf32>
    %c0 = arith.constant 0 : index
    %c0_0 = arith.constant 0 : index
    %c0_1 = arith.constant 0 : index
    %c0_2 = arith.constant 0 : index
    %1 = vector.load %arg6[%c0, %c0_0, %c0_1, %c0_2] : memref<1x4x18x18xf32, #tpu.memory_space<vmem>>, vector<1x4x18x18xf32>
    tpu.vector_store %arg6[%c0, %c0_0, %c0_1, %c0_2], %0 {strides = array<i32>} : memref<1x4x18x18xf32, #tpu.memory_space<vmem>>, vector<1x4x18x18xf32>,
    %c0_3 = arith.constant 0 : index
    %c0_4 = arith.constant 0 : index
    %c0_5 = arith.constant 0 : index
    %c0_6 = arith.constant 0 : index
    %2 = vector.load %arg4[%c0_3, %c0_4, %c0_5, %c0_6] : memref<1x4x16x16xf32, #tpu.memory_space<vmem>>, vector<1x4x16x16xf32>
    %c0_7 = arith.constant 0 : index
    %c0_8 = arith.constant 0 : index
    %c1 = arith.constant 1 : index
    %c1_9 = arith.constant 1 : index
    %3 = vector.load %arg6[%c0_7, %c0_8, %c1, %c1_9] : memref<1x4x18x18xf32, #tpu.memory_space<vmem>>, vector<1x4x16x16xf32>
    tpu.vector_store %arg6[%c0_7, %c0_8, %c1, %c1_9], %2 {strides = array<i32>} : memref<1x4x18x18xf32, #tpu.memory_space<vmem>>, vector<1x4x16x16xf32>,
    %c0_10 = arith.constant 0 : index
    %c0_11 = arith.constant 0 : index
    %4 = vector.load %arg1[%c0_10, %c0_11] : memref<37x64xf32, #tpu.memory_space<vmem>>, vector<37x64xf32>
    %5 = vector.extract_strided_slice %4 {offsets = [36, 0], sizes = [1, 64], strides = [1, 1]} : vector<37x64xf32> to vector<1x64xf32>
    %6 = vector.shape_cast %5 : vector<1x64xf32> to vector<64xf32>
    %7 = vector.shape_cast %6 : vector<64xf32> to vector<1x64xf32>
    %8 = vector.broadcast %7 : vector<1x64xf32> to vector<16x64xf32>
    %c0_12 = arith.constant 0 : index
    %c0_13 = arith.constant 0 : index
    %c0_14 = arith.constant 0 : index
    %c0_15 = arith.constant 0 : index
    %9 = vector.load %arg6[%c0_12, %c0_13, %c0_14, %c0_15] : memref<1x4x18x18xf32, #tpu.memory_space<vmem>>, vector<1x1x16x16xf32>
    %10 = vector.shape_cast %9 : vector<1x1x16x16xf32> to vector<16x16xf32>
    %11 = tpu.concatenate %10, %10, %10, %10 in 1 : vector<16x16xf32>, vector<16x16xf32>, vector<16x16xf32>, vector<16x16xf32> -> vector<16x64xf32>
    %12 = vector.extract_strided_slice %4 {offsets = [0, 0], sizes = [1, 64], strides = [1, 1]} : vector<37x64xf32> to vector<1x64xf32>
    %13 = vector.shape_cast %12 : vector<1x64xf32> to vector<64xf32>
    %14 = vector.shape_cast %13 : vector<64xf32> to vector<1x64xf32>
    %15 = vector.broadcast %14 : vector<1x64xf32> to vector<16x64xf32>
    %16 = arith.mulf %11, %15 : vector<16x64xf32>
    %17 = arith.addf %8, %16 : vector<16x64xf32>
    %c0_16 = arith.constant 0 : index
    %c0_17 = arith.constant 0 : index
    %c0_18 = arith.constant 0 : index
    %c1_19 = arith.constant 1 : index
    %18 = vector.load %arg6[%c0_16, %c0_17, %c0_18, %c1_19] : memref<1x4x18x18xf32, #tpu.memory_space<vmem>>, vector<1x1x16x16xf32>
    %19 = vector.shape_cast %18 : vector<1x1x16x16xf32> to vector<16x16xf32>
    %20 = tpu.concatenate %19, %19, %19, %19 in 1 : vector<16x16xf32>, vector<16x16xf32>, vector<16x16xf32>, vector<16x16xf32> -> vector<16x64xf32>
    %21 = vector.extract_strided_slice %4 {offsets = [1, 0], sizes = [1, 64], strides = [1, 1]} : vector<37x64xf32> to vector<1x64xf32>
    %22 = vector.shape_cast %21 : vector<1x64xf32> to vector<64xf32>
    %23 = vector.shape_cast %22 : vector<64xf32> to vector<1x64xf32>
    %24 = vector.broadcast %23 : vector<1x64xf32> to vector<16x64xf32>
    %25 = arith.mulf %20, %24 : vector<16x64xf32>
    %26 = arith.addf %17, %25 : vector<16x64xf32>
    %c0_20 = arith.constant 0 : index
    %c0_21 = arith.constant 0 : index
    %c0_22 = arith.constant 0 : index
    %c2 = arith.constant 2 : index
    %27 = vector.load %arg6[%c0_20, %c0_21, %c0_22, %c2] : memref<1x4x18x18xf32, #tpu.memory_space<vmem>>, vector<1x1x16x16xf32>
    %28 = vector.shape_cast %27 : vector<1x1x16x16xf32> to vector<16x16xf32>
    %29 = tpu.concatenate %28, %28, %28, %28 in 1 : vector<16x16xf32>, vector<16x16xf32>, vector<16x16xf32>, vector<16x16xf32> -> vector<16x64xf32>
    %30 = vector.extract_strided_slice %4 {offsets = [2, 0], sizes = [1, 64], strides = [1, 1]} : vector<37x64xf32> to vector<1x64xf32>
    %31 = vector.shape_cast %30 : vector<1x64xf32> to vector<64xf32>
    %32 = vector.shape_cast %31 : vector<64xf32> to vector<1x64xf32>
    %33 = vector.broadcast %32 : vector<1x64xf32> to vector<16x64xf32>
    %34 = arith.mulf %29, %33 : vector<16x64xf32>
    %35 = arith.addf %26, %34 : vector<16x64xf32>
    %c0_23 = arith.constant 0 : index
    %c0_24 = arith.constant 0 : index
    %c1_25 = arith.constant 1 : index
    %c0_26 = arith.constant 0 : index
    %36 = vector.load %arg6[%c0_23, %c0_24, %c1_25, %c0_26] : memref<1x4x18x18xf32, #tpu.memory_space<vmem>>, vector<1x1x16x16xf32>
    %37 = vector.shape_cast %36 : vector<1x1x16x16xf32> to vector<16x16xf32>
    %38 = tpu.concatenate %37, %37, %37, %37 in 1 : vector<16x16xf32>, vector<16x16xf32>, vector<16x16xf32>, vector<16x16xf32> -> vector<16x64xf32>
    %39 = vector.extract_strided_slice %4 {offsets = [3, 0], sizes = [1, 64], strides = [1, 1]} : vector<37x64xf32> to vector<1x64xf32>
    %40 = vector.shape_cast %39 : vector<1x64xf32> to vector<64xf32>
    %41 = vector.shape_cast %40 : vector<64xf32> to vector<1x64xf32>
    %42 = vector.broadcast %41 : vector<1x64xf32> to vector<16x64xf32>
    %43 = arith.mulf %38, %42 : vector<16x64xf32>
    %44 = arith.addf %35, %43 : vector<16x64xf32>
    %c0_27 = arith.constant 0 : index
    %c0_28 = arith.constant 0 : index
    %c1_29 = arith.constant 1 : index
    %c1_30 = arith.constant 1 : index
    %45 = vector.load %arg6[%c0_27, %c0_28, %c1_29, %c1_30] : memref<1x4x18x18xf32, #tpu.memory_space<vmem>>, vector<1x1x16x16xf32>
    %46 = vector.shape_cast %45 : vector<1x1x16x16xf32> to vector<16x16xf32>
    %47 = tpu.concatenate %46, %46, %46, %46 in 1 : vector<16x16xf32>, vector<16x16xf32>, vector<16x16xf32>, vector<16x16xf32> -> vector<16x64xf32>
    %48 = vector.extract_strided_slice %4 {offsets = [4, 0], sizes = [1, 64], strides = [1, 1]} : vector<37x64xf32> to vector<1x64xf32>
    %49 = vector.shape_cast %48 : vector<1x64xf32> to vector<64xf32>
    %50 = vector.shape_cast %49 : vector<64xf32> to vector<1x64xf32>
    %51 = vector.broadcast %50 : vector<1x64xf32> to vector<16x64xf32>
    %52 = arith.mulf %47, %51 : vector<16x64xf32>
    %53 = arith.addf %44, %52 : vector<16x64xf32>
    %c0_31 = arith.constant 0 : index
    %c0_32 = arith.constant 0 : index
    %c1_33 = arith.constant 1 : index
    %c2_34 = arith.constant 2 : index
    %54 = vector.load %arg6[%c0_31, %c0_32, %c1_33, %c2_34] : memref<1x4x18x18xf32, #tpu.memory_space<vmem>>, vector<1x1x16x16xf32>
    %55 = vector.shape_cast %54 : vector<1x1x16x16xf32> to vector<16x16xf32>
    %56 = tpu.concatenate %55, %55, %55, %55 in 1 : vector<16x16xf32>, vector<16x16xf32>, vector<16x16xf32>, vector<16x16xf32> -> vector<16x64xf32>
    %57 = vector.extract_strided_slice %4 {offsets = [5, 0], sizes = [1, 64], strides = [1, 1]} : vector<37x64xf32> to vector<1x64xf32>
    %58 = vector.shape_cast %57 : vector<1x64xf32> to vector<64xf32>
    %59 = vector.shape_cast %58 : vector<64xf32> to vector<1x64xf32>
    %60 = vector.broadcast %59 : vector<1x64xf32> to vector<16x64xf32>
    %61 = arith.mulf %56, %60 : vector<16x64xf32>
    %62 = arith.addf %53, %61 : vector<16x64xf32>
    %c0_35 = arith.constant 0 : index
    %c0_36 = arith.constant 0 : index
    %c2_37 = arith.constant 2 : index
    %c0_38 = arith.constant 0 : index
    %63 = vector.load %arg6[%c0_35, %c0_36, %c2_37, %c0_38] : memref<1x4x18x18xf32, #tpu.memory_space<vmem>>, vector<1x1x16x16xf32>
    %64 = vector.shape_cast %63 : vector<1x1x16x16xf32> to vector<16x16xf32>
    %65 = tpu.concatenate %64, %64, %64, %64 in 1 : vector<16x16xf32>, vector<16x16xf32>, vector<16x16xf32>, vector<16x16xf32> -> vector<16x64xf32>
    %66 = vector.extract_strided_slice %4 {offsets = [6, 0], sizes = [1, 64], strides = [1, 1]} : vector<37x64xf32> to vector<1x64xf32>
    %67 = vector.shape_cast %66 : vector<1x64xf32> to vector<64xf32>
    %68 = vector.shape_cast %67 : vector<64xf32> to vector<1x64xf32>
    %69 = vector.broadcast %68 : vector<1x64xf32> to vector<16x64xf32>
    %70 = arith.mulf %65, %69 : vector<16x64xf32>
    %71 = arith.addf %62, %70 : vector<16x64xf32>
    %c0_39 = arith.constant 0 : index
    %c0_40 = arith.constant 0 : index
    %c2_41 = arith.constant 2 : index
    %c1_42 = arith.constant 1 : index
    %72 = vector.load %arg6[%c0_39, %c0_40, %c2_41, %c1_42] : memref<1x4x18x18xf32, #tpu.memory_space<vmem>>, vector<1x1x16x16xf32>
    %73 = vector.shape_cast %72 : vector<1x1x16x16xf32> to vector<16x16xf32>
    %74 = tpu.concatenate %73, %73, %73, %73 in 1 : vector<16x16xf32>, vector<16x16xf32>, vector<16x16xf32>, vector<16x16xf32> -> vector<16x64xf32>
    %75 = vector.extract_strided_slice %4 {offsets = [7, 0], sizes = [1, 64], strides = [1, 1]} : vector<37x64xf32> to vector<1x64xf32>
    %76 = vector.shape_cast %75 : vector<1x64xf32> to vector<64xf32>
    %77 = vector.shape_cast %76 : vector<64xf32> to vector<1x64xf32>
    %78 = vector.broadcast %77 : vector<1x64xf32> to vector<16x64xf32>
    %79 = arith.mulf %74, %78 : vector<16x64xf32>
    %80 = arith.addf %71, %79 : vector<16x64xf32>
    %c0_43 = arith.constant 0 : index
    %c0_44 = arith.constant 0 : index
    %c2_45 = arith.constant 2 : index
    %c2_46 = arith.constant 2 : index
    %81 = vector.load %arg6[%c0_43, %c0_44, %c2_45, %c2_46] : memref<1x4x18x18xf32, #tpu.memory_space<vmem>>, vector<1x1x16x16xf32>
    %82 = vector.shape_cast %81 : vector<1x1x16x16xf32> to vector<16x16xf32>
    %83 = tpu.concatenate %82, %82, %82, %82 in 1 : vector<16x16xf32>, vector<16x16xf32>, vector<16x16xf32>, vector<16x16xf32> -> vector<16x64xf32>
    %84 = vector.extract_strided_slice %4 {offsets = [8, 0], sizes = [1, 64], strides = [1, 1]} : vector<37x64xf32> to vector<1x64xf32>
    %85 = vector.shape_cast %84 : vector<1x64xf32> to vector<64xf32>
    %86 = vector.shape_cast %85 : vector<64xf32> to vector<1x64xf32>
    %87 = vector.broadcast %86 : vector<1x64xf32> to vector<16x64xf32>
    %88 = arith.mulf %83, %87 : vector<16x64xf32>
    %89 = arith.addf %80, %88 : vector<16x64xf32>
    %c0_47 = arith.constant 0 : index
    %c1_48 = arith.constant 1 : index
    %c0_49 = arith.constant 0 : index
    %c0_50 = arith.constant 0 : index
    %90 = vector.load %arg6[%c0_47, %c1_48, %c0_49, %c0_50] : memref<1x4x18x18xf32, #tpu.memory_space<vmem>>, vector<1x1x16x16xf32>
    %91 = vector.shape_cast %90 : vector<1x1x16x16xf32> to vector<16x16xf32>
    %92 = tpu.concatenate %91, %91, %91, %91 in 1 : vector<16x16xf32>, vector<16x16xf32>, vector<16x16xf32>, vector<16x16xf32> -> vector<16x64xf32>
    %93 = vector.extract_strided_slice %4 {offsets = [9, 0], sizes = [1, 64], strides = [1, 1]} : vector<37x64xf32> to vector<1x64xf32>
    %94 = vector.shape_cast %93 : vector<1x64xf32> to vector<64xf32>
    %95 = vector.shape_cast %94 : vector<64xf32> to vector<1x64xf32>
    %96 = vector.broadcast %95 : vector<1x64xf32> to vector<16x64xf32>
    %97 = arith.mulf %92, %96 : vector<16x64xf32>
    %98 = arith.addf %89, %97 : vector<16x64xf32>
    %c0_51 = arith.constant 0 : index
    %c1_52 = arith.constant 1 : index
    %c0_53 = arith.constant 0 : index
    %c1_54 = arith.constant 1 : index
    %99 = vector.load %arg6[%c0_51, %c1_52, %c0_53, %c1_54] : memref<1x4x18x18xf32, #tpu.memory_space<vmem>>, vector<1x1x16x16xf32>
    %100 = vector.shape_cast %99 : vector<1x1x16x16xf32> to vector<16x16xf32>
    %101 = tpu.concatenate %100, %100, %100, %100 in 1 : vector<16x16xf32>, vector<16x16xf32>, vector<16x16xf32>, vector<16x16xf32> -> vector<16x64xf32>
    %102 = vector.extract_strided_slice %4 {offsets = [10, 0], sizes = [1, 64], strides = [1, 1]} : vector<37x64xf32> to vector<1x64xf32>
    %103 = vector.shape_cast %102 : vector<1x64xf32> to vector<64xf32>
    %104 = vector.shape_cast %103 : vector<64xf32> to vector<1x64xf32>
    %105 = vector.broadcast %104 : vector<1x64xf32> to vector<16x64xf32>
    %106 = arith.mulf %101, %105 : vector<16x64xf32>
    %107 = arith.addf %98, %106 : vector<16x64xf32>
    %c0_55 = arith.constant 0 : index
    %c1_56 = arith.constant 1 : index
    %c0_57 = arith.constant 0 : index
    %c2_58 = arith.constant 2 : index
    %108 = vector.load %arg6[%c0_55, %c1_56, %c0_57, %c2_58] : memref<1x4x18x18xf32, #tpu.memory_space<vmem>>, vector<1x1x16x16xf32>
    %109 = vector.shape_cast %108 : vector<1x1x16x16xf32> to vector<16x16xf32>
    %110 = tpu.concatenate %109, %109, %109, %109 in 1 : vector<16x16xf32>, vector<16x16xf32>, vector<16x16xf32>, vector<16x16xf32> -> vector<16x64xf32>
    %111 = vector.extract_strided_slice %4 {offsets = [11, 0], sizes = [1, 64], strides = [1, 1]} : vector<37x64xf32> to vector<1x64xf32>
    %112 = vector.shape_cast %111 : vector<1x64xf32> to vector<64xf32>
    %113 = vector.shape_cast %112 : vector<64xf32> to vector<1x64xf32>
    %114 = vector.broadcast %113 : vector<1x64xf32> to vector<16x64xf32>
    %115 = arith.mulf %110, %114 : vector<16x64xf32>
    %116 = arith.addf %107, %115 : vector<16x64xf32>
    %c0_59 = arith.constant 0 : index
    %c1_60 = arith.constant 1 : index
    %c1_61 = arith.constant 1 : index
    %c0_62 = arith.constant 0 : index
    %117 = vector.load %arg6[%c0_59, %c1_60, %c1_61, %c0_62] : memref<1x4x18x18xf32, #tpu.memory_space<vmem>>, vector<1x1x16x16xf32>
    %118 = vector.shape_cast %117 : vector<1x1x16x16xf32> to vector<16x16xf32>
    %119 = tpu.concatenate %118, %118, %118, %118 in 1 : vector<16x16xf32>, vector<16x16xf32>, vector<16x16xf32>, vector<16x16xf32> -> vector<16x64xf32>
    %120 = vector.extract_strided_slice %4 {offsets = [12, 0], sizes = [1, 64], strides = [1, 1]} : vector<37x64xf32> to vector<1x64xf32>
    %121 = vector.shape_cast %120 : vector<1x64xf32> to vector<64xf32>
    %122 = vector.shape_cast %121 : vector<64xf32> to vector<1x64xf32>
    %123 = vector.broadcast %122 : vector<1x64xf32> to vector<16x64xf32>
    %124 = arith.mulf %119, %123 : vector<16x64xf32>
    %125 = arith.addf %116, %124 : vector<16x64xf32>
    %c0_63 = arith.constant 0 : index
    %c1_64 = arith.constant 1 : index
    %c1_65 = arith.constant 1 : index
    %c1_66 = arith.constant 1 : index
    %126 = vector.load %arg6[%c0_63, %c1_64, %c1_65, %c1_66] : memref<1x4x18x18xf32, #tpu.memory_space<vmem>>, vector<1x1x16x16xf32>
    %127 = vector.shape_cast %126 : vector<1x1x16x16xf32> to vector<16x16xf32>
    %128 = tpu.concatenate %127, %127, %127, %127 in 1 : vector<16x16xf32>, vector<16x16xf32>, vector<16x16xf32>, vector<16x16xf32> -> vector<16x64xf32>
    %129 = vector.extract_strided_slice %4 {offsets = [13, 0], sizes = [1, 64], strides = [1, 1]} : vector<37x64xf32> to vector<1x64xf32>
    %130 = vector.shape_cast %129 : vector<1x64xf32> to vector<64xf32>
    %131 = vector.shape_cast %130 : vector<64xf32> to vector<1x64xf32>
    %132 = vector.broadcast %131 : vector<1x64xf32> to vector<16x64xf32>
    %133 = arith.mulf %128, %132 : vector<16x64xf32>
    %134 = arith.addf %125, %133 : vector<16x64xf32>
    %c0_67 = arith.constant 0 : index
    %c1_68 = arith.constant 1 : index
    %c1_69 = arith.constant 1 : index
    %c2_70 = arith.constant 2 : index
    %135 = vector.load %arg6[%c0_67, %c1_68, %c1_69, %c2_70] : memref<1x4x18x18xf32, #tpu.memory_space<vmem>>, vector<1x1x16x16xf32>
    %136 = vector.shape_cast %135 : vector<1x1x16x16xf32> to vector<16x16xf32>
    %137 = tpu.concatenate %136, %136, %136, %136 in 1 : vector<16x16xf32>, vector<16x16xf32>, vector<16x16xf32>, vector<16x16xf32> -> vector<16x64xf32>
    %138 = vector.extract_strided_slice %4 {offsets = [14, 0], sizes = [1, 64], strides = [1, 1]} : vector<37x64xf32> to vector<1x64xf32>
    %139 = vector.shape_cast %138 : vector<1x64xf32> to vector<64xf32>
    %140 = vector.shape_cast %139 : vector<64xf32> to vector<1x64xf32>
    %141 = vector.broadcast %140 : vector<1x64xf32> to vector<16x64xf32>
    %142 = arith.mulf %137, %141 : vector<16x64xf32>
    %143 = arith.addf %134, %142 : vector<16x64xf32>
    %c0_71 = arith.constant 0 : index
    %c1_72 = arith.constant 1 : index
    %c2_73 = arith.constant 2 : index
    %c0_74 = arith.constant 0 : index
    %144 = vector.load %arg6[%c0_71, %c1_72, %c2_73, %c0_74] : memref<1x4x18x18xf32, #tpu.memory_space<vmem>>, vector<1x1x16x16xf32>
    %145 = vector.shape_cast %144 : vector<1x1x16x16xf32> to vector<16x16xf32>
    %146 = tpu.concatenate %145, %145, %145, %145 in 1 : vector<16x16xf32>, vector<16x16xf32>, vector<16x16xf32>, vector<16x16xf32> -> vector<16x64xf32>
    %147 = vector.extract_strided_slice %4 {offsets = [15, 0], sizes = [1, 64], strides = [1, 1]} : vector<37x64xf32> to vector<1x64xf32>
    %148 = vector.shape_cast %147 : vector<1x64xf32> to vector<64xf32>
    %149 = vector.shape_cast %148 : vector<64xf32> to vector<1x64xf32>
    %150 = vector.broadcast %149 : vector<1x64xf32> to vector<16x64xf32>
    %151 = arith.mulf %146, %150 : vector<16x64xf32>
    %152 = arith.addf %143, %151 : vector<16x64xf32>
    %c0_75 = arith.constant 0 : index
    %c1_76 = arith.constant 1 : index
    %c2_77 = arith.constant 2 : index
    %c1_78 = arith.constant 1 : index
    %153 = vector.load %arg6[%c0_75, %c1_76, %c2_77, %c1_78] : memref<1x4x18x18xf32, #tpu.memory_space<vmem>>, vector<1x1x16x16xf32>
    %154 = vector.shape_cast %153 : vector<1x1x16x16xf32> to vector<16x16xf32>
    %155 = tpu.concatenate %154, %154, %154, %154 in 1 : vector<16x16xf32>, vector<16x16xf32>, vector<16x16xf32>, vector<16x16xf32> -> vector<16x64xf32>
    %156 = vector.extract_strided_slice %4 {offsets = [16, 0], sizes = [1, 64], strides = [1, 1]} : vector<37x64xf32> to vector<1x64xf32>
    %157 = vector.shape_cast %156 : vector<1x64xf32> to vector<64xf32>
    %158 = vector.shape_cast %157 : vector<64xf32> to vector<1x64xf32>
    %159 = vector.broadcast %158 : vector<1x64xf32> to vector<16x64xf32>
    %160 = arith.mulf %155, %159 : vector<16x64xf32>
    %161 = arith.addf %152, %160 : vector<16x64xf32>
    %c0_79 = arith.constant 0 : index
    %c1_80 = arith.constant 1 : index
    %c2_81 = arith.constant 2 : index
    %c2_82 = arith.constant 2 : index
    %162 = vector.load %arg6[%c0_79, %c1_80, %c2_81, %c2_82] : memref<1x4x18x18xf32, #tpu.memory_space<vmem>>, vector<1x1x16x16xf32>
    %163 = vector.shape_cast %162 : vector<1x1x16x16xf32> to vector<16x16xf32>
    %164 = tpu.concatenate %163, %163, %163, %163 in 1 : vector<16x16xf32>, vector<16x16xf32>, vector<16x16xf32>, vector<16x16xf32> -> vector<16x64xf32>
    %165 = vector.extract_strided_slice %4 {offsets = [17, 0], sizes = [1, 64], strides = [1, 1]} : vector<37x64xf32> to vector<1x64xf32>
    %166 = vector.shape_cast %165 : vector<1x64xf32> to vector<64xf32>
    %167 = vector.shape_cast %166 : vector<64xf32> to vector<1x64xf32>
    %168 = vector.broadcast %167 : vector<1x64xf32> to vector<16x64xf32>
    %169 = arith.mulf %164, %168 : vector<16x64xf32>
    %170 = arith.addf %161, %169 : vector<16x64xf32>
    %c0_83 = arith.constant 0 : index
    %c2_84 = arith.constant 2 : index
    %c0_85 = arith.constant 0 : index
    %c0_86 = arith.constant 0 : index
    %171 = vector.load %arg6[%c0_83, %c2_84, %c0_85, %c0_86] : memref<1x4x18x18xf32, #tpu.memory_space<vmem>>, vector<1x1x16x16xf32>
    %172 = vector.shape_cast %171 : vector<1x1x16x16xf32> to vector<16x16xf32>
    %173 = tpu.concatenate %172, %172, %172, %172 in 1 : vector<16x16xf32>, vector<16x16xf32>, vector<16x16xf32>, vector<16x16xf32> -> vector<16x64xf32>
    %174 = vector.extract_strided_slice %4 {offsets = [18, 0], sizes = [1, 64], strides = [1, 1]} : vector<37x64xf32> to vector<1x64xf32>
    %175 = vector.shape_cast %174 : vector<1x64xf32> to vector<64xf32>
    %176 = vector.shape_cast %175 : vector<64xf32> to vector<1x64xf32>
    %177 = vector.broadcast %176 : vector<1x64xf32> to vector<16x64xf32>
    %178 = arith.mulf %173, %177 : vector<16x64xf32>
    %179 = arith.addf %170, %178 : vector<16x64xf32>
    %c0_87 = arith.constant 0 : index
    %c2_88 = arith.constant 2 : index
    %c0_89 = arith.constant 0 : index
    %c1_90 = arith.constant 1 : index
    %180 = vector.load %arg6[%c0_87, %c2_88, %c0_89, %c1_90] : memref<1x4x18x18xf32, #tpu.memory_space<vmem>>, vector<1x1x16x16xf32>
    %181 = vector.shape_cast %180 : vector<1x1x16x16xf32> to vector<16x16xf32>
    %182 = tpu.concatenate %181, %181, %181, %181 in 1 : vector<16x16xf32>, vector<16x16xf32>, vector<16x16xf32>, vector<16x16xf32> -> vector<16x64xf32>
    %183 = vector.extract_strided_slice %4 {offsets = [19, 0], sizes = [1, 64], strides = [1, 1]} : vector<37x64xf32> to vector<1x64xf32>
    %184 = vector.shape_cast %183 : vector<1x64xf32> to vector<64xf32>
    %185 = vector.shape_cast %184 : vector<64xf32> to vector<1x64xf32>
    %186 = vector.broadcast %185 : vector<1x64xf32> to vector<16x64xf32>
    %187 = arith.mulf %182, %186 : vector<16x64xf32>
    %188 = arith.addf %179, %187 : vector<16x64xf32>
    %c0_91 = arith.constant 0 : index
    %c2_92 = arith.constant 2 : index
    %c0_93 = arith.constant 0 : index
    %c2_94 = arith.constant 2 : index
    %189 = vector.load %arg6[%c0_91, %c2_92, %c0_93, %c2_94] : memref<1x4x18x18xf32, #tpu.memory_space<vmem>>, vector<1x1x16x16xf32>
    %190 = vector.shape_cast %189 : vector<1x1x16x16xf32> to vector<16x16xf32>
    %191 = tpu.concatenate %190, %190, %190, %190 in 1 : vector<16x16xf32>, vector<16x16xf32>, vector<16x16xf32>, vector<16x16xf32> -> vector<16x64xf32>
    %192 = vector.extract_strided_slice %4 {offsets = [20, 0], sizes = [1, 64], strides = [1, 1]} : vector<37x64xf32> to vector<1x64xf32>
    %193 = vector.shape_cast %192 : vector<1x64xf32> to vector<64xf32>
    %194 = vector.shape_cast %193 : vector<64xf32> to vector<1x64xf32>
    %195 = vector.broadcast %194 : vector<1x64xf32> to vector<16x64xf32>
    %196 = arith.mulf %191, %195 : vector<16x64xf32>
    %197 = arith.addf %188, %196 : vector<16x64xf32>
    %c0_95 = arith.constant 0 : index
    %c2_96 = arith.constant 2 : index
    %c1_97 = arith.constant 1 : index
    %c0_98 = arith.constant 0 : index
    %198 = vector.load %arg6[%c0_95, %c2_96, %c1_97, %c0_98] : memref<1x4x18x18xf32, #tpu.memory_space<vmem>>, vector<1x1x16x16xf32>
    %199 = vector.shape_cast %198 : vector<1x1x16x16xf32> to vector<16x16xf32>
    %200 = tpu.concatenate %199, %199, %199, %199 in 1 : vector<16x16xf32>, vector<16x16xf32>, vector<16x16xf32>, vector<16x16xf32> -> vector<16x64xf32>
    %201 = vector.extract_strided_slice %4 {offsets = [21, 0], sizes = [1, 64], strides = [1, 1]} : vector<37x64xf32> to vector<1x64xf32>
    %202 = vector.shape_cast %201 : vector<1x64xf32> to vector<64xf32>
    %203 = vector.shape_cast %202 : vector<64xf32> to vector<1x64xf32>
    %204 = vector.broadcast %203 : vector<1x64xf32> to vector<16x64xf32>
    %205 = arith.mulf %200, %204 : vector<16x64xf32>
    %206 = arith.addf %197, %205 : vector<16x64xf32>
    %c0_99 = arith.constant 0 : index
    %c2_100 = arith.constant 2 : index
    %c1_101 = arith.constant 1 : index
    %c1_102 = arith.constant 1 : index
    %207 = vector.load %arg6[%c0_99, %c2_100, %c1_101, %c1_102] : memref<1x4x18x18xf32, #tpu.memory_space<vmem>>, vector<1x1x16x16xf32>
    %208 = vector.shape_cast %207 : vector<1x1x16x16xf32> to vector<16x16xf32>
    %209 = tpu.concatenate %208, %208, %208, %208 in 1 : vector<16x16xf32>, vector<16x16xf32>, vector<16x16xf32>, vector<16x16xf32> -> vector<16x64xf32>
    %210 = vector.extract_strided_slice %4 {offsets = [22, 0], sizes = [1, 64], strides = [1, 1]} : vector<37x64xf32> to vector<1x64xf32>
    %211 = vector.shape_cast %210 : vector<1x64xf32> to vector<64xf32>
    %212 = vector.shape_cast %211 : vector<64xf32> to vector<1x64xf32>
    %213 = vector.broadcast %212 : vector<1x64xf32> to vector<16x64xf32>
    %214 = arith.mulf %209, %213 : vector<16x64xf32>
    %215 = arith.addf %206, %214 : vector<16x64xf32>
    %c0_103 = arith.constant 0 : index
    %c2_104 = arith.constant 2 : index
    %c1_105 = arith.constant 1 : index
    %c2_106 = arith.constant 2 : index
    %216 = vector.load %arg6[%c0_103, %c2_104, %c1_105, %c2_106] : memref<1x4x18x18xf32, #tpu.memory_space<vmem>>, vector<1x1x16x16xf32>
    %217 = vector.shape_cast %216 : vector<1x1x16x16xf32> to vector<16x16xf32>
    %218 = tpu.concatenate %217, %217, %217, %217 in 1 : vector<16x16xf32>, vector<16x16xf32>, vector<16x16xf32>, vector<16x16xf32> -> vector<16x64xf32>
    %219 = vector.extract_strided_slice %4 {offsets = [23, 0], sizes = [1, 64], strides = [1, 1]} : vector<37x64xf32> to vector<1x64xf32>
    %220 = vector.shape_cast %219 : vector<1x64xf32> to vector<64xf32>
    %221 = vector.shape_cast %220 : vector<64xf32> to vector<1x64xf32>
    %222 = vector.broadcast %221 : vector<1x64xf32> to vector<16x64xf32>
    %223 = arith.mulf %218, %222 : vector<16x64xf32>
    %224 = arith.addf %215, %223 : vector<16x64xf32>
    %c0_107 = arith.constant 0 : index
    %c2_108 = arith.constant 2 : index
    %c2_109 = arith.constant 2 : index
    %c0_110 = arith.constant 0 : index
    %225 = vector.load %arg6[%c0_107, %c2_108, %c2_109, %c0_110] : memref<1x4x18x18xf32, #tpu.memory_space<vmem>>, vector<1x1x16x16xf32>
    %226 = vector.shape_cast %225 : vector<1x1x16x16xf32> to vector<16x16xf32>
    %227 = tpu.concatenate %226, %226, %226, %226 in 1 : vector<16x16xf32>, vector<16x16xf32>, vector<16x16xf32>, vector<16x16xf32> -> vector<16x64xf32>
    %228 = vector.extract_strided_slice %4 {offsets = [24, 0], sizes = [1, 64], strides = [1, 1]} : vector<37x64xf32> to vector<1x64xf32>
    %229 = vector.shape_cast %228 : vector<1x64xf32> to vector<64xf32>
    %230 = vector.shape_cast %229 : vector<64xf32> to vector<1x64xf32>
    %231 = vector.broadcast %230 : vector<1x64xf32> to vector<16x64xf32>
    %232 = arith.mulf %227, %231 : vector<16x64xf32>
    %233 = arith.addf %224, %232 : vector<16x64xf32>
    %c0_111 = arith.constant 0 : index
    %c2_112 = arith.constant 2 : index
    %c2_113 = arith.constant 2 : index
    %c1_114 = arith.constant 1 : index
    %234 = vector.load %arg6[%c0_111, %c2_112, %c2_113, %c1_114] : memref<1x4x18x18xf32, #tpu.memory_space<vmem>>, vector<1x1x16x16xf32>
    %235 = vector.shape_cast %234 : vector<1x1x16x16xf32> to vector<16x16xf32>
    %236 = tpu.concatenate %235, %235, %235, %235 in 1 : vector<16x16xf32>, vector<16x16xf32>, vector<16x16xf32>, vector<16x16xf32> -> vector<16x64xf32>
    %237 = vector.extract_strided_slice %4 {offsets = [25, 0], sizes = [1, 64], strides = [1, 1]} : vector<37x64xf32> to vector<1x64xf32>
    %238 = vector.shape_cast %237 : vector<1x64xf32> to vector<64xf32>
    %239 = vector.shape_cast %238 : vector<64xf32> to vector<1x64xf32>
    %240 = vector.broadcast %239 : vector<1x64xf32> to vector<16x64xf32>
    %241 = arith.mulf %236, %240 : vector<16x64xf32>
    %242 = arith.addf %233, %241 : vector<16x64xf32>
    %c0_115 = arith.constant 0 : index
    %c2_116 = arith.constant 2 : index
    %c2_117 = arith.constant 2 : index
    %c2_118 = arith.constant 2 : index
    %243 = vector.load %arg6[%c0_115, %c2_116, %c2_117, %c2_118] : memref<1x4x18x18xf32, #tpu.memory_space<vmem>>, vector<1x1x16x16xf32>
    %244 = vector.shape_cast %243 : vector<1x1x16x16xf32> to vector<16x16xf32>
    %245 = tpu.concatenate %244, %244, %244, %244 in 1 : vector<16x16xf32>, vector<16x16xf32>, vector<16x16xf32>, vector<16x16xf32> -> vector<16x64xf32>
    %246 = vector.extract_strided_slice %4 {offsets = [26, 0], sizes = [1, 64], strides = [1, 1]} : vector<37x64xf32> to vector<1x64xf32>
    %247 = vector.shape_cast %246 : vector<1x64xf32> to vector<64xf32>
    %248 = vector.shape_cast %247 : vector<64xf32> to vector<1x64xf32>
    %249 = vector.broadcast %248 : vector<1x64xf32> to vector<16x64xf32>
    %250 = arith.mulf %245, %249 : vector<16x64xf32>
    %251 = arith.addf %242, %250 : vector<16x64xf32>
    %c0_119 = arith.constant 0 : index
    %c3 = arith.constant 3 : index
    %c0_120 = arith.constant 0 : index
    %c0_121 = arith.constant 0 : index
    %252 = vector.load %arg6[%c0_119, %c3, %c0_120, %c0_121] : memref<1x4x18x18xf32, #tpu.memory_space<vmem>>, vector<1x1x16x16xf32>
    %253 = vector.shape_cast %252 : vector<1x1x16x16xf32> to vector<16x16xf32>
    %254 = tpu.concatenate %253, %253, %253, %253 in 1 : vector<16x16xf32>, vector<16x16xf32>, vector<16x16xf32>, vector<16x16xf32> -> vector<16x64xf32>
    %255 = vector.extract_strided_slice %4 {offsets = [27, 0], sizes = [1, 64], strides = [1, 1]} : vector<37x64xf32> to vector<1x64xf32>
    %256 = vector.shape_cast %255 : vector<1x64xf32> to vector<64xf32>
    %257 = vector.shape_cast %256 : vector<64xf32> to vector<1x64xf32>
    %258 = vector.broadcast %257 : vector<1x64xf32> to vector<16x64xf32>
    %259 = arith.mulf %254, %258 : vector<16x64xf32>
    %260 = arith.addf %251, %259 : vector<16x64xf32>
    %c0_122 = arith.constant 0 : index
    %c3_123 = arith.constant 3 : index
    %c0_124 = arith.constant 0 : index
    %c1_125 = arith.constant 1 : index
    %261 = vector.load %arg6[%c0_122, %c3_123, %c0_124, %c1_125] : memref<1x4x18x18xf32, #tpu.memory_space<vmem>>, vector<1x1x16x16xf32>
    %262 = vector.shape_cast %261 : vector<1x1x16x16xf32> to vector<16x16xf32>
    %263 = tpu.concatenate %262, %262, %262, %262 in 1 : vector<16x16xf32>, vector<16x16xf32>, vector<16x16xf32>, vector<16x16xf32> -> vector<16x64xf32>
    %264 = vector.extract_strided_slice %4 {offsets = [28, 0], sizes = [1, 64], strides = [1, 1]} : vector<37x64xf32> to vector<1x64xf32>
    %265 = vector.shape_cast %264 : vector<1x64xf32> to vector<64xf32>
    %266 = vector.shape_cast %265 : vector<64xf32> to vector<1x64xf32>
    %267 = vector.broadcast %266 : vector<1x64xf32> to vector<16x64xf32>
    %268 = arith.mulf %263, %267 : vector<16x64xf32>
    %269 = arith.addf %260, %268 : vector<16x64xf32>
    %c0_126 = arith.constant 0 : index
    %c3_127 = arith.constant 3 : index
    %c0_128 = arith.constant 0 : index
    %c2_129 = arith.constant 2 : index
    %270 = vector.load %arg6[%c0_126, %c3_127, %c0_128, %c2_129] : memref<1x4x18x18xf32, #tpu.memory_space<vmem>>, vector<1x1x16x16xf32>
    %271 = vector.shape_cast %270 : vector<1x1x16x16xf32> to vector<16x16xf32>
    %272 = tpu.concatenate %271, %271, %271, %271 in 1 : vector<16x16xf32>, vector<16x16xf32>, vector<16x16xf32>, vector<16x16xf32> -> vector<16x64xf32>
    %273 = vector.extract_strided_slice %4 {offsets = [29, 0], sizes = [1, 64], strides = [1, 1]} : vector<37x64xf32> to vector<1x64xf32>
    %274 = vector.shape_cast %273 : vector<1x64xf32> to vector<64xf32>
    %275 = vector.shape_cast %274 : vector<64xf32> to vector<1x64xf32>
    %276 = vector.broadcast %275 : vector<1x64xf32> to vector<16x64xf32>
    %277 = arith.mulf %272, %276 : vector<16x64xf32>
    %278 = arith.addf %269, %277 : vector<16x64xf32>
    %c0_130 = arith.constant 0 : index
    %c3_131 = arith.constant 3 : index
    %c1_132 = arith.constant 1 : index
    %c0_133 = arith.constant 0 : index
    %279 = vector.load %arg6[%c0_130, %c3_131, %c1_132, %c0_133] : memref<1x4x18x18xf32, #tpu.memory_space<vmem>>, vector<1x1x16x16xf32>
    %280 = vector.shape_cast %279 : vector<1x1x16x16xf32> to vector<16x16xf32>
    %281 = tpu.concatenate %280, %280, %280, %280 in 1 : vector<16x16xf32>, vector<16x16xf32>, vector<16x16xf32>, vector<16x16xf32> -> vector<16x64xf32>
    %282 = vector.extract_strided_slice %4 {offsets = [30, 0], sizes = [1, 64], strides = [1, 1]} : vector<37x64xf32> to vector<1x64xf32>
    %283 = vector.shape_cast %282 : vector<1x64xf32> to vector<64xf32>
    %284 = vector.shape_cast %283 : vector<64xf32> to vector<1x64xf32>
    %285 = vector.broadcast %284 : vector<1x64xf32> to vector<16x64xf32>
    %286 = arith.mulf %281, %285 : vector<16x64xf32>
    %287 = arith.addf %278, %286 : vector<16x64xf32>
    %c0_134 = arith.constant 0 : index
    %c3_135 = arith.constant 3 : index
    %c1_136 = arith.constant 1 : index
    %c1_137 = arith.constant 1 : index
    %288 = vector.load %arg6[%c0_134, %c3_135, %c1_136, %c1_137] : memref<1x4x18x18xf32, #tpu.memory_space<vmem>>, vector<1x1x16x16xf32>
    %289 = vector.shape_cast %288 : vector<1x1x16x16xf32> to vector<16x16xf32>
    %290 = tpu.concatenate %289, %289, %289, %289 in 1 : vector<16x16xf32>, vector<16x16xf32>, vector<16x16xf32>, vector<16x16xf32> -> vector<16x64xf32>
    %291 = vector.extract_strided_slice %4 {offsets = [31, 0], sizes = [1, 64], strides = [1, 1]} : vector<37x64xf32> to vector<1x64xf32>
    %292 = vector.shape_cast %291 : vector<1x64xf32> to vector<64xf32>
    %293 = vector.shape_cast %292 : vector<64xf32> to vector<1x64xf32>
    %294 = vector.broadcast %293 : vector<1x64xf32> to vector<16x64xf32>
    %295 = arith.mulf %290, %294 : vector<16x64xf32>
    %296 = arith.addf %287, %295 : vector<16x64xf32>
    %c0_138 = arith.constant 0 : index
    %c3_139 = arith.constant 3 : index
    %c1_140 = arith.constant 1 : index
    %c2_141 = arith.constant 2 : index
    %297 = vector.load %arg6[%c0_138, %c3_139, %c1_140, %c2_141] : memref<1x4x18x18xf32, #tpu.memory_space<vmem>>, vector<1x1x16x16xf32>
    %298 = vector.shape_cast %297 : vector<1x1x16x16xf32> to vector<16x16xf32>
    %299 = tpu.concatenate %298, %298, %298, %298 in 1 : vector<16x16xf32>, vector<16x16xf32>, vector<16x16xf32>, vector<16x16xf32> -> vector<16x64xf32>
    %300 = vector.extract_strided_slice %4 {offsets = [32, 0], sizes = [1, 64], strides = [1, 1]} : vector<37x64xf32> to vector<1x64xf32>
    %301 = vector.shape_cast %300 : vector<1x64xf32> to vector<64xf32>
    %302 = vector.shape_cast %301 : vector<64xf32> to vector<1x64xf32>
    %303 = vector.broadcast %302 : vector<1x64xf32> to vector<16x64xf32>
    %304 = arith.mulf %299, %303 : vector<16x64xf32>
    %305 = arith.addf %296, %304 : vector<16x64xf32>
    %c0_142 = arith.constant 0 : index
    %c3_143 = arith.constant 3 : index
    %c2_144 = arith.constant 2 : index
    %c0_145 = arith.constant 0 : index
    %306 = vector.load %arg6[%c0_142, %c3_143, %c2_144, %c0_145] : memref<1x4x18x18xf32, #tpu.memory_space<vmem>>, vector<1x1x16x16xf32>
    %307 = vector.shape_cast %306 : vector<1x1x16x16xf32> to vector<16x16xf32>
    %308 = tpu.concatenate %307, %307, %307, %307 in 1 : vector<16x16xf32>, vector<16x16xf32>, vector<16x16xf32>, vector<16x16xf32> -> vector<16x64xf32>
    %309 = vector.extract_strided_slice %4 {offsets = [33, 0], sizes = [1, 64], strides = [1, 1]} : vector<37x64xf32> to vector<1x64xf32>
    %310 = vector.shape_cast %309 : vector<1x64xf32> to vector<64xf32>
    %311 = vector.shape_cast %310 : vector<64xf32> to vector<1x64xf32>
    %312 = vector.broadcast %311 : vector<1x64xf32> to vector<16x64xf32>
    %313 = arith.mulf %308, %312 : vector<16x64xf32>
    %314 = arith.addf %305, %313 : vector<16x64xf32>
    %c0_146 = arith.constant 0 : index
    %c3_147 = arith.constant 3 : index
    %c2_148 = arith.constant 2 : index
    %c1_149 = arith.constant 1 : index
    %315 = vector.load %arg6[%c0_146, %c3_147, %c2_148, %c1_149] : memref<1x4x18x18xf32, #tpu.memory_space<vmem>>, vector<1x1x16x16xf32>
    %316 = vector.shape_cast %315 : vector<1x1x16x16xf32> to vector<16x16xf32>
    %317 = tpu.concatenate %316, %316, %316, %316 in 1 : vector<16x16xf32>, vector<16x16xf32>, vector<16x16xf32>, vector<16x16xf32> -> vector<16x64xf32>
    %318 = vector.extract_strided_slice %4 {offsets = [34, 0], sizes = [1, 64], strides = [1, 1]} : vector<37x64xf32> to vector<1x64xf32>
    %319 = vector.shape_cast %318 : vector<1x64xf32> to vector<64xf32>
    %320 = vector.shape_cast %319 : vector<64xf32> to vector<1x64xf32>
    %321 = vector.broadcast %320 : vector<1x64xf32> to vector<16x64xf32>
    %322 = arith.mulf %317, %321 : vector<16x64xf32>
    %323 = arith.addf %314, %322 : vector<16x64xf32>
    %c0_150 = arith.constant 0 : index
    %c3_151 = arith.constant 3 : index
    %c2_152 = arith.constant 2 : index
    %c2_153 = arith.constant 2 : index
    %324 = vector.load %arg6[%c0_150, %c3_151, %c2_152, %c2_153] : memref<1x4x18x18xf32, #tpu.memory_space<vmem>>, vector<1x1x16x16xf32>
    %325 = vector.shape_cast %324 : vector<1x1x16x16xf32> to vector<16x16xf32>
    %326 = tpu.concatenate %325, %325, %325, %325 in 1 : vector<16x16xf32>, vector<16x16xf32>, vector<16x16xf32>, vector<16x16xf32> -> vector<16x64xf32>
    %327 = vector.extract_strided_slice %4 {offsets = [35, 0], sizes = [1, 64], strides = [1, 1]} : vector<37x64xf32> to vector<1x64xf32>
    %328 = vector.shape_cast %327 : vector<1x64xf32> to vector<64xf32>
    %329 = vector.shape_cast %328 : vector<64xf32> to vector<1x64xf32>
    %330 = vector.broadcast %329 : vector<1x64xf32> to vector<16x64xf32>
    %331 = arith.mulf %326, %330 : vector<16x64xf32>
    %332 = arith.addf %323, %331 : vector<16x64xf32>
    %cst_154 = arith.constant 0.000000e+00 : f32
    %333 = vector.broadcast %cst_154 : f32 to vector<16x64xf32>
    %334 = arith.maximumf %332, %333 : vector<16x64xf32>
    %c0_155 = arith.constant 0 : index
    %c0_156 = arith.constant 0 : index
    %335 = vector.load %arg3[%c0_155, %c0_156] : memref<32x16xf32, #tpu.memory_space<vmem>>, vector<32x16xf32>
    %cst_157 = arith.constant dense<0.000000e+00> : vector<32x64xf32>
    %336 = tpu.matmul %335, %334, %cst_157 {dimension_numbers = #tpu.dot_dimension_numbers<[1], [0], [0], [1], [0, 0, 1, 1], [], []>} : vector<32x16xf32>, vector<16x64xf32>, vector<32x64xf32> -> vector<32x64xf32>
    %c0_158 = arith.constant 0 : index
    %c0_159 = arith.constant 0 : index
    %337 = vector.load %arg2[%c0_158, %c0_159] : memref<64x128xf32, #tpu.memory_space<vmem>>, vector<64x128xf32>
    %cst_160 = arith.constant dense<0.000000e+00> : vector<32x128xf32>
    %338 = tpu.matmul %336, %337, %cst_160 {dimension_numbers = #tpu.dot_dimension_numbers<[1], [0], [0], [1], [0, 0, 1, 1], [], []>} : vector<32x64xf32>, vector<64x128xf32>, vector<32x128xf32> -> vector<32x128xf32>
    %c0_161 = arith.constant 0 : index
    %c0_162 = arith.constant 0 : index
    %339 = vector.load %arg5[%c0_161, %c0_162] : memref<32x128xf32, #tpu.memory_space<vmem>>, vector<32x128xf32>
    tpu.vector_store %arg5[%c0_161, %c0_162], %338 {strides = array<i32>} : memref<32x128xf32, #tpu.memory_space<vmem>>, vector<32x128xf32>,
    return
  }
  func.func @transform_0(%arg0: i32) -> (i32, i32) {
    %c0_i32 = arith.constant 0 : i32
    %c0_i32_0 = arith.constant 0 : i32
    %c0_i32_1 = arith.constant 0 : i32
    return %c0_i32, %c0_i32_0 : i32, i32
  }
  func.func @transform_1(%arg0: i32) -> (i32, i32) {
    %c0_i32 = arith.constant 0 : i32
    %c0_i32_0 = arith.constant 0 : i32
    %c0_i32_1 = arith.constant 0 : i32
    return %c0_i32, %c0_i32_0 : i32, i32
  }
  func.func @transform_2(%arg0: i32) -> (i32, i32) {
    %c0_i32 = arith.constant 0 : i32
    %c0_i32_0 = arith.constant 0 : i32
    %c0_i32_1 = arith.constant 0 : i32
    return %c0_i32, %c0_i32_0 : i32, i32
  }
  func.func @transform_3(%arg0: i32) -> (i32, i32, i32, i32) {
    %c0_i32 = arith.constant 0 : i32
    %c0_i32_0 = arith.constant 0 : i32
    %c0_i32_1 = arith.constant 0 : i32
    %c0_i32_2 = arith.constant 0 : i32
    return %arg0, %c0_i32, %c0_i32_0, %c0_i32_1 : i32, i32, i32, i32
  }
  func.func @transform_4(%arg0: i32) -> (i32, i32) {
    %c0_i32 = arith.constant 0 : i32
    %c0_i32_0 = arith.constant 0 : i32
    return %arg0, %c0_i32 : i32, i32
  }
}

</mosaic_0001>

<llo_original>
// kernel: tpu_custom_call.1
$region0: #{tpu_custom_call.1}
  #allocation0 [shape = 'u32[]', space=smem, size = 0x4, offset = 0x4, fixed_abs, tag = 'smem constant byte address 0x4 - core index']
  #allocation1 [shape = 'u32[144,128]{1,0:T(1,128)}', space=vmem, size = 0x12000, scoped, tag = 'internal scratch']
  #allocation2 [shape = 'f32[1,4,18,18]{3,2,1,0:T(8,128)}', space=vmem, size = 0xc000, scoped, tag = 'scratch operand']
  %s0 = inlined_call_operand.vmem [shape: f32[37,64], index: 0, kind: input, shape index: {}]
  %s1 = inlined_call_operand.hbm [shape: f32[64,128], index: 1, kind: input, shape index: {}]
  %s2 = inlined_call_operand.vmem [shape: f32[32,16], index: 2, kind: input, shape index: {}]
  %s3 = inlined_call_operand.hbm [shape: f32[2,4,16,16], index: 3, kind: input, shape index: {}]
  %s4 = inlined_call_operand.hbm [shape: f32[64,128], index: 4, kind: output, shape index: {}]
  %s5 = sld [smem:[#allocation0]]
  $region57: #{tpu_custom_call.1} parent=0
    _
  %s7 = ssub.s32 1, %s5
  %s8 = scalar_select 0, %s7, %s5
  $region1: #{tpu_custom_call.1} parent=0
    #allocation3 [shape = 'u8[32768]{0}', space=vmem, size = 0x8000, scoped, tag = 'input window, operand 1, single buffered']
    #allocation4 [shape = 's32[2]{0}', space=sflag, size = 0x8, scoped, tag = 'scoped memory for tpu_custom_call.1']
    #allocation5 [shape = 's32[2]{0}', space=sflag, size = 0x8, scoped, tag = 'scoped memory for tpu_custom_call.1']
    #allocation6 [shape = 'u8[65536]{0}', space=vmem, size = 0x10000, scoped, tag = 'input window, operand 3']
    #allocation7 [shape = 's32[2]{0}', space=sflag, size = 0x8, scoped, tag = 'scoped memory for tpu_custom_call.1']
    #allocation8 [shape = 'u8[32768]{0}', space=vmem, size = 0x8000, scoped, tag = 'output window, operand 0']
    %9 = vsyncpa [#allocation4], 0
    %10 = vsyncpa [#allocation7], 0
    %s11 = scalar_lea.sflag [#allocation7], 1
    %12 = vsyncpa %s11, 0
    %13 = vsyncpa [#allocation5], 0
    %s14 = scalar_lea.sflag [#allocation5], 1
    %15 = vsyncpa %s14, 0
    loop: start=0, step=1, limit=4
    $region2: #{tpu_custom_call.1} parent=1 // loop_pre_header
      _
    $region3: #{tpu_custom_call.1} parent=1 // loop_header
      %s17 = sphi 0, %s21
      %p18 = scmp.ge.s32.totalorder %s17, 4
      %s25 = sphi 0, %s25
      %s27 = sphi 0, %s25
      %s28 = sphi 0, %s27
      %s42 = sphi 0, %s28
      %s46 = sphi 0, %s46
      %s48 = sphi 0, %s46
      %s49 = sphi 0, %s48
      %s63 = sphi 0, %s49
      %s67 = sphi 0, %s67
      %s69 = sphi 0, %s67
      %s70 = sphi 0, %s69
      %s84 = sphi 0, %s70
      %s90 = sphi 0, %s92
      %s93 = sphi 0, %s90
      %s94 = sphi 0, %s93
      %s110 = sphi 0, %s94
      %s116 = sphi 0, %s118
      %s119 = sphi 0, %s116
      %s120 = sphi 0, %s119
      %s136 = sphi 0, %s120
    $region4: #{tpu_custom_call.1} parent=1 // loop_header_branch
      %20 = sbr.rel (%p18) target = $region8
    $region5: #{tpu_custom_call.1} parent=1 // loop_body
      %s22 = ssub.s32 %s17, 1
      %s23 = ssub.s32 %s17, 2
      %s24 = sadd.s32 %s17, 1
      %s26 = sadd.s32 %s25, 1
      %p29 = scmp.eq.s32.totalorder %s17, 1
      %p30 = scmp.ne.s32.totalorder %s25, %s27
      %p31 = scmp.eq.s32.totalorder %s17, 0
      %p32 = por %p30, %p31
      %p33 = scmp.ne.s32.totalorder %s25, %s27
      %p34 = scmp.eq.s32.totalorder %s22, 1
      %p35 = por %p33, %p34
      %p36 = scmp.ne.s32.totalorder %s27, %s28
      %p37 = scmp.eq.s32.totalorder %s22, 0
      %p38 = por %p36, %p37
      %p39 = scmp.ne.s32.totalorder %s27, %s28
      %p40 = scmp.eq.s32.totalorder %s23, 1
      %p41 = por %p39, %p40
      %p43 = scmp.ne.s32.totalorder %s28, %s42
      %p44 = scmp.eq.s32.totalorder %s23, 0
      %p45 = por %p43, %p44
      %s47 = sadd.s32 %s46, 1
      %p50 = scmp.eq.s32.totalorder %s17, 1
      %p51 = scmp.ne.s32.totalorder %s46, %s48
      %p52 = scmp.eq.s32.totalorder %s17, 0
      %p53 = por %p51, %p52
      %p54 = scmp.ne.s32.totalorder %s46, %s48
      %p55 = scmp.eq.s32.totalorder %s22, 1
      %p56 = por %p54, %p55
      %p57 = scmp.ne.s32.totalorder %s48, %s49
      %p58 = scmp.eq.s32.totalorder %s22, 0
      %p59 = por %p57, %p58
      %p60 = scmp.ne.s32.totalorder %s48, %s49
      %p61 = scmp.eq.s32.totalorder %s23, 1
      %p62 = por %p60, %p61
      %p64 = scmp.ne.s32.totalorder %s49, %s63
      %p65 = scmp.eq.s32.totalorder %s23, 0
      %p66 = por %p64, %p65
      %s68 = sadd.s32 %s67, 1
      %p71 = scmp.eq.s32.totalorder %s17, 1
      %p72 = scmp.ne.s32.totalorder %s67, %s69
      %p73 = scmp.eq.s32.totalorder %s17, 0
      %p74 = por %p72, %p73
      %p75 = scmp.ne.s32.totalorder %s67, %s69
      %p76 = scmp.eq.s32.totalorder %s22, 1
      %p77 = por %p75, %p76
      %p78 = scmp.ne.s32.totalorder %s69, %s70
      %p79 = scmp.eq.s32.totalorder %s22, 0
      %p80 = por %p78, %p79
      %p81 = scmp.ne.s32.totalorder %s69, %s70
      %p82 = scmp.eq.s32.totalorder %s23, 1
      %p83 = por %p81, %p82
      %p85 = scmp.ne.s32.totalorder %s70, %s84
      %p86 = scmp.eq.s32.totalorder %s23, 0
      %p87 = por %p85, %p86
      %s88 = ssub.s32 %s17, %s24
      %p89 = scmp.eq.s32.totalorder %s88, 0
      %s91 = sadd.s32 %s90, 1
      %s92 = scalar_select %p89, %s90, %s91
      %p95 = pneg %p89
      %p96 = scmp.eq.s32.totalorder %s17, 1
      %p97 = por %p95, %p96
      %p98 = scmp.ne.s32.totalorder %s90, %s93
      %p99 = scmp.eq.s32.totalorder %s17, 0
      %p100 = por %p98, %p99
      %p101 = scmp.ne.s32.totalorder %s90, %s93
      %p102 = scmp.eq.s32.totalorder %s22, 1
      %p103 = por %p101, %p102
      %p104 = scmp.ne.s32.totalorder %s93, %s94
      %p105 = scmp.eq.s32.totalorder %s22, 0
      %p106 = por %p104, %p105
      %p107 = scmp.ne.s32.totalorder %s93, %s94
      %p108 = scmp.eq.s32.totalorder %s23, 1
      %p109 = por %p107, %p108
      %p111 = scmp.ne.s32.totalorder %s94, %s110
      %p112 = scmp.eq.s32.totalorder %s23, 0
      %p113 = por %p111, %p112
      %s114 = ssub.s32 %s17, %s24
      %p115 = scmp.eq.s32.totalorder %s114, 0
      %s117 = sadd.s32 %s116, 1
      %s118 = scalar_select %p115, %s116, %s117
      %p121 = pneg %p115
      %p122 = scmp.eq.s32.totalorder %s17, 1
      %p123 = por %p121, %p122
      %p124 = scmp.ne.s32.totalorder %s116, %s119
      %p125 = scmp.eq.s32.totalorder %s17, 0
      %p126 = por %p124, %p125
      %p127 = scmp.ne.s32.totalorder %s116, %s119
      %p128 = scmp.eq.s32.totalorder %s22, 1
      %p129 = por %p127, %p128
      %p130 = scmp.ne.s32.totalorder %s119, %s120
      %p131 = scmp.eq.s32.totalorder %s22, 0
      %p132 = por %p130, %p131
      %p133 = scmp.ne.s32.totalorder %s119, %s120
      %p134 = scmp.eq.s32.totalorder %s23, 1
      %p135 = por %p133, %p134
      %p137 = scmp.ne.s32.totalorder %s120, %s136
      %p138 = scmp.eq.s32.totalorder %s23, 0
      %p139 = por %p137, %p138
      %p140 = scmp.le.s32.totalorder 1, %s17
      %p141 = scmp.lt.s32.totalorder %s17, 3
      %p142 = pnand %p140, %p141
      %p143 = pneg %p142
      // Predicated region
      $region9: #{tpu_custom_call.1} parent=5 // pred_check
        _
      $region10: #{tpu_custom_call.1} parent=5 // pred_check_branch
        %145 = sbr.rel (%p142) target = $region12
      $region11: #{tpu_custom_call.1} parent=5 // pred_region
        %s146 = ssub.s32 %s17, 1
        // Predicated region
        $region13: #{tpu_custom_call.1} parent=11 // pred_check
          %p147 = pneg %p38
        $region14: #{tpu_custom_call.1} parent=11 // pred_check_branch
          %149 = sbr.rel (%p147) target = $region16
        $region15: #{tpu_custom_call.1} parent=11 // pred_region
          _
        $region16: #{tpu_custom_call.1} parent=11 // pred_fallthru
          _
        // Predicated region
        $region17: #{tpu_custom_call.1} parent=11 // pred_check
          %p150 = pneg %p59
        $region18: #{tpu_custom_call.1} parent=11 // pred_check_branch
          %152 = sbr.rel (%p150) target = $region20
        $region19: #{tpu_custom_call.1} parent=11 // pred_region
          %s154 = ssub.s32 1024, 1024
          %155 = vsyncadd [#allocation4], %s154
          %s156 = sshll.u32 [#allocation3], 4
          %s157 = int_to_ptr.vmem [resolvable:$true] %s156
          %162 = dma.hbm_to_vmem [thread:$0]  %s1, 1024, %s157, [#allocation4], 128, 128, 8
        $region20: #{tpu_custom_call.1} parent=11 // pred_fallthru
          _
        // Predicated region
        $region21: #{tpu_custom_call.1} parent=11 // pred_check
          %p163 = pneg %p80
        $region22: #{tpu_custom_call.1} parent=11 // pred_check_branch
          %165 = sbr.rel (%p163) target = $region24
        $region23: #{tpu_custom_call.1} parent=11 // pred_region
          _
        $region24: #{tpu_custom_call.1} parent=11 // pred_fallthru
          _
      $region12: #{tpu_custom_call.1} parent=5 // pred_fallthru
        _
      %p166 = scmp.lt.s32.totalorder %s17, 2
      // Predicated region
      $region25: #{tpu_custom_call.1} parent=5 // pred_check
        %p167 = pneg %p166
      $region26: #{tpu_custom_call.1} parent=5 // pred_check_branch
        %169 = sbr.rel (%p167) target = $region28
      $region27: #{tpu_custom_call.1} parent=5 // pred_region
        // Predicated region
        $region29: #{tpu_custom_call.1} parent=27 // pred_check
          %p170 = pneg %p100
        $region30: #{tpu_custom_call.1} parent=27 // pred_check_branch
          %172 = sbr.rel (%p170) target = $region32
        $region31: #{tpu_custom_call.1} parent=27 // pred_region
          %s173 = sand.u32 %s90, 1
          %s174 = scalar_lea.sflag [#allocation7], %s173
          %s175 = sand.u32 %s90, 1
          %s176 = smul.addr %s175, 64
          %s177 = scalar_lea.vmem [#allocation6], %s176
          %s179 = ssub.s32 1024, 1024
          %180 = vsyncadd %s174, %s179
          %s181 = smul.addr %s17, 8
          %s182 = smul.addr %s181, 128
          %s183 = scalar_lea.hbm %s3, %s182
          %s184 = sshll.u32 %s177, 4
          %s185 = int_to_ptr.vmem [resolvable:$true] %s184
          %190 = dma.hbm_to_vmem [thread:$0]  %s183, 1024, %s185, %s174, 128, 128, 8
        $region32: #{tpu_custom_call.1} parent=27 // pred_fallthru
          _
      $region28: #{tpu_custom_call.1} parent=5 // pred_fallthru
        _
      %p191 = scmp.le.s32.totalorder 1, %s17
      %p192 = scmp.lt.s32.totalorder %s17, 3
      %p193 = pnand %p191, %p192
      %p194 = pneg %p193
      // Predicated region
      $region33: #{tpu_custom_call.1} parent=5 // pred_check
        _
      $region34: #{tpu_custom_call.1} parent=5 // pred_check_branch
        %196 = sbr.rel (%p193) target = $region36
      $region35: #{tpu_custom_call.1} parent=5 // pred_region
        %s197 = ssub.s32 %s17, 1
        // Predicated region
        $region37: #{tpu_custom_call.1} parent=35 // pred_check
          %p198 = pneg %p59
        $region38: #{tpu_custom_call.1} parent=35 // pred_check_branch
          %200 = sbr.rel (%p198) target = $region40
        $region39: #{tpu_custom_call.1} parent=35 // pred_region
          %201 = dma.done [#allocation4], 1024
        $region40: #{tpu_custom_call.1} parent=35 // pred_fallthru
          _
        %s202 = sand.u32 %s93, 1
        %s203 = scalar_lea.sflag [#allocation7], %s202
        %s204 = sand.u32 %s93, 1
        %s205 = smul.addr %s204, 64
        %s206 = scalar_lea.vmem [#allocation6], %s205
        // Predicated region
        $region41: #{tpu_custom_call.1} parent=35 // pred_check
          %p207 = pneg %p106
        $region42: #{tpu_custom_call.1} parent=35 // pred_check_branch
          %209 = sbr.rel (%p207) target = $region44
        $region43: #{tpu_custom_call.1} parent=35 // pred_region
          %210 = dma.done %s203, 1024
        $region44: #{tpu_custom_call.1} parent=35 // pred_fallthru
          _
        %p211 = pneg %p38
        %p212 = pneg %p35
        %p213 = pneg %p59
        %p214 = pneg %p56
        %p215 = pneg %p80
        %p216 = pneg %p77
        %s217 = sand.u32 %s93, 1
        %s218 = scalar_lea.sflag [#allocation7], %s217
        %s219 = sand.u32 %s93, 1
        %s220 = smul.addr %s219, 64
        %s221 = scalar_lea.vmem [#allocation6], %s220
        %p222 = pneg %p106
        %p223 = pneg %p103
        %p224 = pneg %p132
        %p225 = pneg %p129
        %s226 = sand.u32 %s119, 1
        %s227 = scalar_lea.sflag [#allocation5], %s226
        %s228 = sand.u32 %s119, 1
        %s229 = smul.addr %s228, 32
        %s230 = scalar_lea.vmem [#allocation8], %s229
        %s231 = smul.u32 4, %s22
        %vm232 = vcmask 146432
        %233 = vst.msk [vmem:[#allocation2] sm:$0xff] %vm232, 0.0
        %234 = vst.msk [vmem:[#allocation2 + $0x8] sm:$0xff] %vm232, 0.0
        %vm235 = vcmask 140288
        %236 = vst.msk [vmem:[#allocation2 + $0x10] sm:$0x3] %vm235, 0.0
        %237 = vst.msk [vmem:[#allocation2 + $0x18] sm:$0xff] %vm232, 0.0
        %238 = vst.msk [vmem:[#allocation2 + $0x20] sm:$0xff] %vm232, 0.0
        %239 = vst.msk [vmem:[#allocation2 + $0x28] sm:$0x3] %vm235, 0.0
        %240 = vst.msk [vmem:[#allocation2 + $0x30] sm:$0xff] %vm232, 0.0
        %241 = vst.msk [vmem:[#allocation2 + $0x38] sm:$0xff] %vm232, 0.0
        %242 = vst.msk [vmem:[#allocation2 + $0x40] sm:$0x3] %vm235, 0.0
        %243 = vst.msk [vmem:[#allocation2 + $0x48] sm:$0xff] %vm232, 0.0
        %244 = vst.msk [vmem:[#allocation2 + $0x50] sm:$0xff] %vm232, 0.0
        %245 = vst.msk [vmem:[#allocation2 + $0x58] sm:$0x3] %vm235, 0.0
        %v246 = vld [vmem:[%s206] sm:$0xff]
        %v247 = vld [vmem:[%s206 + $0x8] sm:$0xff]
        %v248 = vld [vmem:[%s206 + $0x10] sm:$0xff]
        %v249 = vld [vmem:[%s206 + $0x18] sm:$0xff]
        %v250 = vld [vmem:[%s206 + $0x20] sm:$0xff]
        %v251 = vld [vmem:[%s206 + $0x28] sm:$0xff]
        %v252 = vld [vmem:[%s206 + $0x30] sm:$0xff]
        %v253 = vld [vmem:[%s206 + $0x38] sm:$0xff]
        %262 = vrot.lane.b32.xlu0 %v246, 1
        %v263 = vpop.permute.xlu0 %262
        %264 = vrot.lane.b32.xlu0 %v247, 1
        %v265 = vpop.permute.xlu0 %264
        %266 = vrot.lane.b32.xlu0 %v248, 1
        %v267 = vpop.permute.xlu0 %266
        %268 = vrot.lane.b32.xlu0 %v249, 1
        %v269 = vpop.permute.xlu0 %268
        %270 = vrot.lane.b32.xlu0 %v250, 1
        %v271 = vpop.permute.xlu0 %270
        %272 = vrot.lane.b32.xlu0 %v251, 1
        %v273 = vpop.permute.xlu0 %272
        %274 = vrot.lane.b32.xlu0 %v252, 1
        %v275 = vpop.permute.xlu0 %274
        %276 = vrot.lane.b32.xlu0 %v253, 1
        %v277 = vpop.permute.xlu0 %276
        %vm286 = vcmask 138248
        %287 = vst.msk [vmem:[#allocation2 + $0x1] sm:$0xff] %vm286, %v263
        %288 = vst.msk [vmem:[#allocation2 + $0x9] sm:$0xff] %vm286, %v265
        %289 = vst.msk [vmem:[#allocation2 + $0x19] sm:$0xff] %vm286, %v267
        %290 = vst.msk [vmem:[#allocation2 + $0x21] sm:$0xff] %vm286, %v269
        %291 = vst.msk [vmem:[#allocation2 + $0x31] sm:$0xff] %vm286, %v271
        %292 = vst.msk [vmem:[#allocation2 + $0x39] sm:$0xff] %vm286, %v273
        %293 = vst.msk [vmem:[#allocation2 + $0x49] sm:$0xff] %vm286, %v275
        %294 = vst.msk [vmem:[#allocation2 + $0x51] sm:$0xff] %vm286, %v277
        %v295 = vld [vmem:[%s0] sm:$0xff]
        %v296 = vld [vmem:[%s0 + $0x8] sm:$0xff]
        %v297 = vld [vmem:[%s0 + $0x10] sm:$0xff]
        %v298 = vld [vmem:[%s0 + $0x18] sm:$0xff]
        %v299 = vld [vmem:[%s0 + $0x20] sm:$0x1f]
        %v300 = vlaneseq
        %v301 = vshrl.u32 %v300, 7
        %v302 = vsub.s32 4, %v301
        %v303 = vrot.slane %v299, %v302
        %v304 = vld [vmem:[#allocation2] sm:$0xff]
        %v305 = vld [vmem:[#allocation2 + $0x8] sm:$0xff]
        %308 = vrot.lane.b32.xlu0 %v304, 16
        %v309 = vpop.permute.xlu0 %308
        %310 = vrot.lane.b32.xlu0 %v305, 16
        %v311 = vpop.permute.xlu0 %310
        %314 = vrot.lane.b32.xlu0 %v304, 32
        %v315 = vpop.permute.xlu0 %314
        %316 = vrot.lane.b32.xlu0 %v305, 32
        %v317 = vpop.permute.xlu0 %316
        %320 = vrot.lane.b32.xlu0 %v304, 48
        %v321 = vpop.permute.xlu0 %320
        %322 = vrot.lane.b32.xlu0 %v305, 48
        %v323 = vpop.permute.xlu0 %322
        %vm326 = vcmask 130048
        %v327 = vsel %vm326, %v304, %v309
        %v328 = vsel %vm326, %v305, %v311
        %vm329 = vcmask 261120
        %v330 = vsel %vm329, %v327, %v315
        %v331 = vsel %vm329, %v328, %v317
        %vm332 = vcmask 392192
        %v333 = vsel %vm332, %v330, %v321
        %v334 = vsel %vm332, %v331, %v323
        %v335 = vlaneseq
        %v336 = vshrl.u32 %v335, 7
        %v337 = vsub.s32 0, %v336
        %v338 = vrot.slane %v295, %v337
        %v339 = vmul.f32 %v333, %v338
        %v340 = vmul.f32 %v334, %v338
        %v341 = vadd.f32 %v303, %v339
        %v342 = vadd.f32 %v303, %v340
        %343 = vrot.lane.b32.xlu0 %v304, 127
        %v344 = vpop.permute.xlu0 %343
        %345 = vrot.lane.b32.xlu0 %v305, 127
        %v346 = vpop.permute.xlu0 %345
        %349 = vrot.lane.b32.xlu0 %v304, 15
        %v350 = vpop.permute.xlu0 %349
        %351 = vrot.lane.b32.xlu0 %v305, 15
        %v352 = vpop.permute.xlu0 %351
        %355 = vrot.lane.b32.xlu0 %v304, 31
        %v356 = vpop.permute.xlu0 %355
        %357 = vrot.lane.b32.xlu0 %v305, 31
        %v358 = vpop.permute.xlu0 %357
        %361 = vrot.lane.b32.xlu0 %v304, 47
        %v362 = vpop.permute.xlu0 %361
        %363 = vrot.lane.b32.xlu0 %v305, 47
        %v364 = vpop.permute.xlu0 %363
        %v367 = vsel %vm326, %v344, %v350
        %v368 = vsel %vm326, %v346, %v352
        %v369 = vsel %vm329, %v367, %v356
        %v370 = vsel %vm329, %v368, %v358
        %v371 = vsel %vm332, %v369, %v362
        %v372 = vsel %vm332, %v370, %v364
        %v373 = vlaneseq
        %v374 = vshrl.u32 %v373, 7
        %v375 = vsub.s32 1, %v374
        %v376 = vrot.slane %v295, %v375
        %v377 = vmul.f32 %v371, %v376
        %v378 = vmul.f32 %v372, %v376
        %v379 = vadd.f32 %v341, %v377
        %v380 = vadd.f32 %v342, %v378
        %381 = vrot.lane.b32.xlu0 %v304, 126
        %v382 = vpop.permute.xlu0 %381
        %383 = vrot.lane.b32.xlu0 %v305, 126
        %v384 = vpop.permute.xlu0 %383
        %387 = vrot.lane.b32.xlu0 %v304, 14
        %v388 = vpop.permute.xlu0 %387
        %389 = vrot.lane.b32.xlu0 %v305, 14
        %v390 = vpop.permute.xlu0 %389
        %393 = vrot.lane.b32.xlu0 %v304, 30
        %v394 = vpop.permute.xlu0 %393
        %395 = vrot.lane.b32.xlu0 %v305, 30
        %v396 = vpop.permute.xlu0 %395
        %399 = vrot.lane.b32.xlu0 %v304, 46
        %v400 = vpop.permute.xlu0 %399
        %401 = vrot.lane.b32.xlu0 %v305, 46
        %v402 = vpop.permute.xlu0 %401
        %v405 = vsel %vm326, %v382, %v388
        %v406 = vsel %vm326, %v384, %v390
        %v407 = vsel %vm329, %v405, %v394
        %v408 = vsel %vm329, %v406, %v396
        %v409 = vsel %vm332, %v407, %v400
        %v410 = vsel %vm332, %v408, %v402
        %v411 = vlaneseq
        %v412 = vshrl.u32 %v411, 7
        %v413 = vsub.s32 2, %v412
        %v414 = vrot.slane %v295, %v413
        %v415 = vmul.f32 %v409, %v414
        %v416 = vmul.f32 %v410, %v414
        %v417 = vadd.f32 %v379, %v415
        %v418 = vadd.f32 %v380, %v416
        %v419 = vld [vmem:[#allocation2 + $0x1] sm:$0xff]
        %v420 = vld [vmem:[#allocation2 + $0x9] sm:$0xff]
        %423 = vrot.lane.b32.xlu0 %v419, 16
        %v424 = vpop.permute.xlu0 %423
        %425 = vrot.lane.b32.xlu0 %v420, 16
        %v426 = vpop.permute.xlu0 %425
        %429 = vrot.lane.b32.xlu0 %v419, 32
        %v430 = vpop.permute.xlu0 %429
        %431 = vrot.lane.b32.xlu0 %v420, 32
        %v432 = vpop.permute.xlu0 %431
        %435 = vrot.lane.b32.xlu0 %v419, 48
        %v436 = vpop.permute.xlu0 %435
        %437 = vrot.lane.b32.xlu0 %v420, 48
        %v438 = vpop.permute.xlu0 %437
        %v441 = vsel %vm326, %v419, %v424
        %v442 = vsel %vm326, %v420, %v426
        %v443 = vsel %vm329, %v441, %v430
        %v444 = vsel %vm329, %v442, %v432
        %v445 = vsel %vm332, %v443, %v436
        %v446 = vsel %vm332, %v444, %v438
        %v447 = vlaneseq
        %v448 = vshrl.u32 %v447, 7
        %v449 = vsub.s32 3, %v448
        %v450 = vrot.slane %v295, %v449
        %v451 = vmul.f32 %v445, %v450
        %v452 = vmul.f32 %v446, %v450
        %v453 = vadd.f32 %v417, %v451
        %v454 = vadd.f32 %v418, %v452
        %455 = vrot.lane.b32.xlu0 %v419, 127
        %v456 = vpop.permute.xlu0 %455
        %457 = vrot.lane.b32.xlu0 %v420, 127
        %v458 = vpop.permute.xlu0 %457
        %461 = vrot.lane.b32.xlu0 %v419, 15
        %v462 = vpop.permute.xlu0 %461
        %463 = vrot.lane.b32.xlu0 %v420, 15
        %v464 = vpop.permute.xlu0 %463
        %467 = vrot.lane.b32.xlu0 %v419, 31
        %v468 = vpop.permute.xlu0 %467
        %469 = vrot.lane.b32.xlu0 %v420, 31
        %v470 = vpop.permute.xlu0 %469
        %473 = vrot.lane.b32.xlu0 %v419, 47
        %v474 = vpop.permute.xlu0 %473
        %475 = vrot.lane.b32.xlu0 %v420, 47
        %v476 = vpop.permute.xlu0 %475
        %v479 = vsel %vm326, %v456, %v462
        %v480 = vsel %vm326, %v458, %v464
        %v481 = vsel %vm329, %v479, %v468
        %v482 = vsel %vm329, %v480, %v470
        %v483 = vsel %vm332, %v481, %v474
        %v484 = vsel %vm332, %v482, %v476
        %v485 = vlaneseq
        %v486 = vshrl.u32 %v485, 7
        %v487 = vsub.s32 4, %v486
        %v488 = vrot.slane %v295, %v487
        %v489 = vmul.f32 %v483, %v488
        %v490 = vmul.f32 %v484, %v488
        %v491 = vadd.f32 %v453, %v489
        %v492 = vadd.f32 %v454, %v490
        %493 = vrot.lane.b32.xlu0 %v419, 126
        %v494 = vpop.permute.xlu0 %493
        %495 = vrot.lane.b32.xlu0 %v420, 126
        %v496 = vpop.permute.xlu0 %495
        %499 = vrot.lane.b32.xlu0 %v419, 14
        %v500 = vpop.permute.xlu0 %499
        %501 = vrot.lane.b32.xlu0 %v420, 14
        %v502 = vpop.permute.xlu0 %501
        %505 = vrot.lane.b32.xlu0 %v419, 30
        %v506 = vpop.permute.xlu0 %505
        %507 = vrot.lane.b32.xlu0 %v420, 30
        %v508 = vpop.permute.xlu0 %507
        %511 = vrot.lane.b32.xlu0 %v419, 46
        %v512 = vpop.permute.xlu0 %511
        %513 = vrot.lane.b32.xlu0 %v420, 46
        %v514 = vpop.permute.xlu0 %513
        %v517 = vsel %vm326, %v494, %v500
        %v518 = vsel %vm326, %v496, %v502
        %v519 = vsel %vm329, %v517, %v506
        %v520 = vsel %vm329, %v518, %v508
        %v521 = vsel %vm332, %v519, %v512
        %v522 = vsel %vm332, %v520, %v514
        %v523 = vlaneseq
        %v524 = vshrl.u32 %v523, 7
        %v525 = vsub.s32 5, %v524
        %v526 = vrot.slane %v295, %v525
        %v527 = vmul.f32 %v521, %v526
        %v528 = vmul.f32 %v522, %v526
        %v529 = vadd.f32 %v491, %v527
        %v530 = vadd.f32 %v492, %v528
        %v531 = vld [vmem:[#allocation2 + $0x2] sm:$0xff]
        %v532 = vld [vmem:[#allocation2 + $0xa] sm:$0xff]
        %535 = vrot.lane.b32.xlu0 %v531, 16
        %v536 = vpop.permute.xlu0 %535
        %537 = vrot.lane.b32.xlu0 %v532, 16
        %v538 = vpop.permute.xlu0 %537
        %541 = vrot.lane.b32.xlu0 %v531, 32
        %v542 = vpop.permute.xlu0 %541
        %543 = vrot.lane.b32.xlu0 %v532, 32
        %v544 = vpop.permute.xlu0 %543
        %547 = vrot.lane.b32.xlu0 %v531, 48
        %v548 = vpop.permute.xlu0 %547
        %549 = vrot.lane.b32.xlu0 %v532, 48
        %v550 = vpop.permute.xlu0 %549
        %v553 = vsel %vm326, %v531, %v536
        %v554 = vsel %vm326, %v532, %v538
        %v555 = vsel %vm329, %v553, %v542
        %v556 = vsel %vm329, %v554, %v544
        %v557 = vsel %vm332, %v555, %v548
        %v558 = vsel %vm332, %v556, %v550
        %v559 = vlaneseq
        %v560 = vshrl.u32 %v559, 7
        %v561 = vsub.s32 6, %v560
        %v562 = vrot.slane %v295, %v561
        %v563 = vmul.f32 %v557, %v562
        %v564 = vmul.f32 %v558, %v562
        %v565 = vadd.f32 %v529, %v563
        %v566 = vadd.f32 %v530, %v564
        %567 = vrot.lane.b32.xlu0 %v531, 127
        %v568 = vpop.permute.xlu0 %567
        %569 = vrot.lane.b32.xlu0 %v532, 127
        %v570 = vpop.permute.xlu0 %569
        %573 = vrot.lane.b32.xlu0 %v531, 15
        %v574 = vpop.permute.xlu0 %573
        %575 = vrot.lane.b32.xlu0 %v532, 15
        %v576 = vpop.permute.xlu0 %575
        %579 = vrot.lane.b32.xlu0 %v531, 31
        %v580 = vpop.permute.xlu0 %579
        %581 = vrot.lane.b32.xlu0 %v532, 31
        %v582 = vpop.permute.xlu0 %581
        %585 = vrot.lane.b32.xlu0 %v531, 47
        %v586 = vpop.permute.xlu0 %585
        %587 = vrot.lane.b32.xlu0 %v532, 47
        %v588 = vpop.permute.xlu0 %587
        %v591 = vsel %vm326, %v568, %v574
        %v592 = vsel %vm326, %v570, %v576
        %v593 = vsel %vm329, %v591, %v580
        %v594 = vsel %vm329, %v592, %v582
        %v595 = vsel %vm332, %v593, %v586
        %v596 = vsel %vm332, %v594, %v588
        %v597 = vlaneseq
        %v598 = vshrl.u32 %v597, 7
        %v599 = vsub.s32 7, %v598
        %v600 = vrot.slane %v295, %v599
        %v601 = vmul.f32 %v595, %v600
        %v602 = vmul.f32 %v596, %v600
        %v603 = vadd.f32 %v565, %v601
        %v604 = vadd.f32 %v566, %v602
        %605 = vrot.lane.b32.xlu0 %v531, 126
        %v606 = vpop.permute.xlu0 %605
        %607 = vrot.lane.b32.xlu0 %v532, 126
        %v608 = vpop.permute.xlu0 %607
        %611 = vrot.lane.b32.xlu0 %v531, 14
        %v612 = vpop.permute.xlu0 %611
        %613 = vrot.lane.b32.xlu0 %v532, 14
        %v614 = vpop.permute.xlu0 %613
        %617 = vrot.lane.b32.xlu0 %v531, 30
        %v618 = vpop.permute.xlu0 %617
        %619 = vrot.lane.b32.xlu0 %v532, 30
        %v620 = vpop.permute.xlu0 %619
        %623 = vrot.lane.b32.xlu0 %v531, 46
        %v624 = vpop.permute.xlu0 %623
        %625 = vrot.lane.b32.xlu0 %v532, 46
        %v626 = vpop.permute.xlu0 %625
        %v629 = vsel %vm326, %v606, %v612
        %v630 = vsel %vm326, %v608, %v614
        %v631 = vsel %vm329, %v629, %v618
        %v632 = vsel %vm329, %v630, %v620
        %v633 = vsel %vm332, %v631, %v624
        %v634 = vsel %vm332, %v632, %v626
        %v635 = vlaneseq
        %v636 = vshrl.u32 %v635, 7
        %v637 = vsub.s32 0, %v636
        %v638 = vrot.slane %v296, %v637
        %v639 = vmul.f32 %v633, %v638
        %v640 = vmul.f32 %v634, %v638
        %v641 = vadd.f32 %v603, %v639
        %v642 = vadd.f32 %v604, %v640
        %s643 = scalar_lea.vmem [#allocation2], 24
        %v644 = vld [vmem:[%s643] sm:$0xff]
        %v645 = vld [vmem:[%s643 + $0x8] sm:$0xff]
        %648 = vrot.lane.b32.xlu0 %v644, 16
        %v649 = vpop.permute.xlu0 %648
        %650 = vrot.lane.b32.xlu0 %v645, 16
        %v651 = vpop.permute.xlu0 %650
        %654 = vrot.lane.b32.xlu0 %v644, 32
        %v655 = vpop.permute.xlu0 %654
        %656 = vrot.lane.b32.xlu0 %v645, 32
        %v657 = vpop.permute.xlu0 %656
        %660 = vrot.lane.b32.xlu0 %v644, 48
        %v661 = vpop.permute.xlu0 %660
        %662 = vrot.lane.b32.xlu0 %v645, 48
        %v663 = vpop.permute.xlu0 %662
        %v666 = vsel %vm326, %v644, %v649
        %v667 = vsel %vm326, %v645, %v651
        %v668 = vsel %vm329, %v666, %v655
        %v669 = vsel %vm329, %v667, %v657
        %v670 = vsel %vm332, %v668, %v661
        %v671 = vsel %vm332, %v669, %v663
        %v672 = vlaneseq
        %v673 = vshrl.u32 %v672, 7
        %v674 = vsub.s32 1, %v673
        %v675 = vrot.slane %v296, %v674
        %v676 = vmul.f32 %v670, %v675
        %v677 = vmul.f32 %v671, %v675
        %v678 = vadd.f32 %v641, %v676
        %v679 = vadd.f32 %v642, %v677
        %680 = vrot.lane.b32.xlu0 %v644, 127
        %v681 = vpop.permute.xlu0 %680
        %682 = vrot.lane.b32.xlu0 %v645, 127
        %v683 = vpop.permute.xlu0 %682
        %686 = vrot.lane.b32.xlu0 %v644, 15
        %v687 = vpop.permute.xlu0 %686
        %688 = vrot.lane.b32.xlu0 %v645, 15
        %v689 = vpop.permute.xlu0 %688
        %692 = vrot.lane.b32.xlu0 %v644, 31
        %v693 = vpop.permute.xlu0 %692
        %694 = vrot.lane.b32.xlu0 %v645, 31
        %v695 = vpop.permute.xlu0 %694
        %698 = vrot.lane.b32.xlu0 %v644, 47
        %v699 = vpop.permute.xlu0 %698
        %700 = vrot.lane.b32.xlu0 %v645, 47
        %v701 = vpop.permute.xlu0 %700
        %v704 = vsel %vm326, %v681, %v687
        %v705 = vsel %vm326, %v683, %v689
        %v706 = vsel %vm329, %v704, %v693
        %v707 = vsel %vm329, %v705, %v695
        %v708 = vsel %vm332, %v706, %v699
        %v709 = vsel %vm332, %v707, %v701
        %v710 = vlaneseq
        %v711 = vshrl.u32 %v710, 7
        %v712 = vsub.s32 2, %v711
        %v713 = vrot.slane %v296, %v712
        %v714 = vmul.f32 %v708, %v713
        %v715 = vmul.f32 %v709, %v713
        %v716 = vadd.f32 %v678, %v714
        %v717 = vadd.f32 %v679, %v715
        %718 = vrot.lane.b32.xlu0 %v644, 126
        %v719 = vpop.permute.xlu0 %718
        %720 = vrot.lane.b32.xlu0 %v645, 126
        %v721 = vpop.permute.xlu0 %720
        %724 = vrot.lane.b32.xlu0 %v644, 14
        %v725 = vpop.permute.xlu0 %724
        %726 = vrot.lane.b32.xlu0 %v645, 14
        %v727 = vpop.permute.xlu0 %726
        %730 = vrot.lane.b32.xlu0 %v644, 30
        %v731 = vpop.permute.xlu0 %730
        %732 = vrot.lane.b32.xlu0 %v645, 30
        %v733 = vpop.permute.xlu0 %732
        %736 = vrot.lane.b32.xlu0 %v644, 46
        %v737 = vpop.permute.xlu0 %736
        %738 = vrot.lane.b32.xlu0 %v645, 46
        %v739 = vpop.permute.xlu0 %738
        %v742 = vsel %vm326, %v719, %v725
        %v743 = vsel %vm326, %v721, %v727
        %v744 = vsel %vm329, %v742, %v731
        %v745 = vsel %vm329, %v743, %v733
        %v746 = vsel %vm332, %v744, %v737
        %v747 = vsel %vm332, %v745, %v739
        %v748 = vlaneseq
        %v749 = vshrl.u32 %v748, 7
        %v750 = vsub.s32 3, %v749
        %v751 = vrot.slane %v296, %v750
        %v752 = vmul.f32 %v746, %v751
        %v753 = vmul.f32 %v747, %v751
        %v754 = vadd.f32 %v716, %v752
        %v755 = vadd.f32 %v717, %v753
        %v756 = vld [vmem:[%s643 + $0x1] sm:$0xff]
        %v757 = vld [vmem:[%s643 + $0x9] sm:$0xff]
        %760 = vrot.lane.b32.xlu0 %v756, 16
        %v761 = vpop.permute.xlu0 %760
        %762 = vrot.lane.b32.xlu0 %v757, 16
        %v763 = vpop.permute.xlu0 %762
        %766 = vrot.lane.b32.xlu0 %v756, 32
        %v767 = vpop.permute.xlu0 %766
        %768 = vrot.lane.b32.xlu0 %v757, 32
        %v769 = vpop.permute.xlu0 %768
        %772 = vrot.lane.b32.xlu0 %v756, 48
        %v773 = vpop.permute.xlu0 %772
        %774 = vrot.lane.b32.xlu0 %v757, 48
        %v775 = vpop.permute.xlu0 %774
        %v778 = vsel %vm326, %v756, %v761
        %v779 = vsel %vm326, %v757, %v763
        %v780 = vsel %vm329, %v778, %v767
        %v781 = vsel %vm329, %v779, %v769
        %v782 = vsel %vm332, %v780, %v773
        %v783 = vsel %vm332, %v781, %v775
        %v784 = vlaneseq
        %v785 = vshrl.u32 %v784, 7
        %v786 = vsub.s32 4, %v785
        %v787 = vrot.slane %v296, %v786
        %v788 = vmul.f32 %v782, %v787
        %v789 = vmul.f32 %v783, %v787
        %v790 = vadd.f32 %v754, %v788
        %v791 = vadd.f32 %v755, %v789
        %792 = vrot.lane.b32.xlu0 %v756, 127
        %v793 = vpop.permute.xlu0 %792
        %794 = vrot.lane.b32.xlu0 %v757, 127
        %v795 = vpop.permute.xlu0 %794
        %798 = vrot.lane.b32.xlu0 %v756, 15
        %v799 = vpop.permute.xlu0 %798
        %800 = vrot.lane.b32.xlu0 %v757, 15
        %v801 = vpop.permute.xlu0 %800
        %804 = vrot.lane.b32.xlu0 %v756, 31
        %v805 = vpop.permute.xlu0 %804
        %806 = vrot.lane.b32.xlu0 %v757, 31
        %v807 = vpop.permute.xlu0 %806
        %810 = vrot.lane.b32.xlu0 %v756, 47
        %v811 = vpop.permute.xlu0 %810
        %812 = vrot.lane.b32.xlu0 %v757, 47
        %v813 = vpop.permute.xlu0 %812
        %v816 = vsel %vm326, %v793, %v799
        %v817 = vsel %vm326, %v795, %v801
        %v818 = vsel %vm329, %v816, %v805
        %v819 = vsel %vm329, %v817, %v807
        %v820 = vsel %vm332, %v818, %v811
        %v821 = vsel %vm332, %v819, %v813
        %v822 = vlaneseq
        %v823 = vshrl.u32 %v822, 7
        %v824 = vsub.s32 5, %v823
        %v825 = vrot.slane %v296, %v824
        %v826 = vmul.f32 %v820, %v825
        %v827 = vmul.f32 %v821, %v825
        %v828 = vadd.f32 %v790, %v826
        %v829 = vadd.f32 %v791, %v827
        %830 = vrot.lane.b32.xlu0 %v756, 126
        %v831 = vpop.permute.xlu0 %830
        %832 = vrot.lane.b32.xlu0 %v757, 126
        %v833 = vpop.permute.xlu0 %832
        %836 = vrot.lane.b32.xlu0 %v756, 14
        %v837 = vpop.permute.xlu0 %836
        %838 = vrot.lane.b32.xlu0 %v757, 14
        %v839 = vpop.permute.xlu0 %838
        %842 = vrot.lane.b32.xlu0 %v756, 30
        %v843 = vpop.permute.xlu0 %842
        %844 = vrot.lane.b32.xlu0 %v757, 30
        %v845 = vpop.permute.xlu0 %844
        %848 = vrot.lane.b32.xlu0 %v756, 46
        %v849 = vpop.permute.xlu0 %848
        %850 = vrot.lane.b32.xlu0 %v757, 46
        %v851 = vpop.permute.xlu0 %850
        %v854 = vsel %vm326, %v831, %v837
        %v855 = vsel %vm326, %v833, %v839
        %v856 = vsel %vm329, %v854, %v843
        %v857 = vsel %vm329, %v855, %v845
        %v858 = vsel %vm332, %v856, %v849
        %v859 = vsel %vm332, %v857, %v851
        %v860 = vlaneseq
        %v861 = vshrl.u32 %v860, 7
        %v862 = vsub.s32 6, %v861
        %v863 = vrot.slane %v296, %v862
        %v864 = vmul.f32 %v858, %v863
        %v865 = vmul.f32 %v859, %v863
        %v866 = vadd.f32 %v828, %v864
        %v867 = vadd.f32 %v829, %v865
        %v868 = vld [vmem:[%s643 + $0x2] sm:$0xff]
        %v869 = vld [vmem:[%s643 + $0xa] sm:$0xff]
        %872 = vrot.lane.b32.xlu0 %v868, 16
        %v873 = vpop.permute.xlu0 %872
        %874 = vrot.lane.b32.xlu0 %v869, 16
        %v875 = vpop.permute.xlu0 %874
        %878 = vrot.lane.b32.xlu0 %v868, 32
        %v879 = vpop.permute.xlu0 %878
        %880 = vrot.lane.b32.xlu0 %v869, 32
        %v881 = vpop.permute.xlu0 %880
        %884 = vrot.lane.b32.xlu0 %v868, 48
        %v885 = vpop.permute.xlu0 %884
        %886 = vrot.lane.b32.xlu0 %v869, 48
        %v887 = vpop.permute.xlu0 %886
        %v890 = vsel %vm326, %v868, %v873
        %v891 = vsel %vm326, %v869, %v875
        %v892 = vsel %vm329, %v890, %v879
        %v893 = vsel %vm329, %v891, %v881
        %v894 = vsel %vm332, %v892, %v885
        %v895 = vsel %vm332, %v893, %v887
        %v896 = vlaneseq
        %v897 = vshrl.u32 %v896, 7
        %v898 = vsub.s32 7, %v897
        %v899 = vrot.slane %v296, %v898
        %v900 = vmul.f32 %v894, %v899
        %v901 = vmul.f32 %v895, %v899
        %v902 = vadd.f32 %v866, %v900
        %v903 = vadd.f32 %v867, %v901
        %904 = vrot.lane.b32.xlu0 %v868, 127
        %v905 = vpop.permute.xlu0 %904
        %906 = vrot.lane.b32.xlu0 %v869, 127
        %v907 = vpop.permute.xlu0 %906
        %910 = vrot.lane.b32.xlu0 %v868, 15
        %v911 = vpop.permute.xlu0 %910
        %912 = vrot.lane.b32.xlu0 %v869, 15
        %v913 = vpop.permute.xlu0 %912
        %916 = vrot.lane.b32.xlu0 %v868, 31
        %v917 = vpop.permute.xlu0 %916
        %918 = vrot.lane.b32.xlu0 %v869, 31
        %v919 = vpop.permute.xlu0 %918
        %922 = vrot.lane.b32.xlu0 %v868, 47
        %v923 = vpop.permute.xlu0 %922
        %924 = vrot.lane.b32.xlu0 %v869, 47
        %v925 = vpop.permute.xlu0 %924
        %v928 = vsel %vm326, %v905, %v911
        %v929 = vsel %vm326, %v907, %v913
        %v930 = vsel %vm329, %v928, %v917
        %v931 = vsel %vm329, %v929, %v919
        %v932 = vsel %vm332, %v930, %v923
        %v933 = vsel %vm332, %v931, %v925
        %v934 = vlaneseq
        %v935 = vshrl.u32 %v934, 7
        %v936 = vsub.s32 0, %v935
        %v937 = vrot.slane %v297, %v936
        %v938 = vmul.f32 %v932, %v937
        %v939 = vmul.f32 %v933, %v937
        %v940 = vadd.f32 %v902, %v938
        %v941 = vadd.f32 %v903, %v939
        %942 = vrot.lane.b32.xlu0 %v868, 126
        %v943 = vpop.permute.xlu0 %942
        %944 = vrot.lane.b32.xlu0 %v869, 126
        %v945 = vpop.permute.xlu0 %944
        %948 = vrot.lane.b32.xlu0 %v868, 14
        %v949 = vpop.permute.xlu0 %948
        %950 = vrot.lane.b32.xlu0 %v869, 14
        %v951 = vpop.permute.xlu0 %950
        %954 = vrot.lane.b32.xlu0 %v868, 30
        %v955 = vpop.permute.xlu0 %954
        %956 = vrot.lane.b32.xlu0 %v869, 30
        %v957 = vpop.permute.xlu0 %956
        %960 = vrot.lane.b32.xlu0 %v868, 46
        %v961 = vpop.permute.xlu0 %960
        %962 = vrot.lane.b32.xlu0 %v869, 46
        %v963 = vpop.permute.xlu0 %962
        %v966 = vsel %vm326, %v943, %v949
        %v967 = vsel %vm326, %v945, %v951
        %v968 = vsel %vm329, %v966, %v955
        %v969 = vsel %vm329, %v967, %v957
        %v970 = vsel %vm332, %v968, %v961
        %v971 = vsel %vm332, %v969, %v963
        %v972 = vlaneseq
        %v973 = vshrl.u32 %v972, 7
        %v974 = vsub.s32 1, %v973
        %v975 = vrot.slane %v297, %v974
        %v976 = vmul.f32 %v970, %v975
        %v977 = vmul.f32 %v971, %v975
        %v978 = vadd.f32 %v940, %v976
        %v979 = vadd.f32 %v941, %v977
        %s980 = scalar_lea.vmem [#allocation2], 48
        %v981 = vld [vmem:[%s980] sm:$0xff]
        %v982 = vld [vmem:[%s980 + $0x8] sm:$0xff]
        %985 = vrot.lane.b32.xlu0 %v981, 16
        %v986 = vpop.permute.xlu0 %985
        %987 = vrot.lane.b32.xlu0 %v982, 16
        %v988 = vpop.permute.xlu0 %987
        %991 = vrot.lane.b32.xlu0 %v981, 32
        %v992 = vpop.permute.xlu0 %991
        %993 = vrot.lane.b32.xlu0 %v982, 32
        %v994 = vpop.permute.xlu0 %993
        %997 = vrot.lane.b32.xlu0 %v981, 48
        %v998 = vpop.permute.xlu0 %997
        %999 = vrot.lane.b32.xlu0 %v982, 48
        %v1000 = vpop.permute.xlu0 %999
        %v1003 = vsel %vm326, %v981, %v986
        %v1004 = vsel %vm326, %v982, %v988
        %v1005 = vsel %vm329, %v1003, %v992
        %v1006 = vsel %vm329, %v1004, %v994
        %v1007 = vsel %vm332, %v1005, %v998
        %v1008 = vsel %vm332, %v1006, %v1000
        %v1009 = vlaneseq
        %v1010 = vshrl.u32 %v1009, 7
        %v1011 = vsub.s32 2, %v1010
        %v1012 = vrot.slane %v297, %v1011
        %v1013 = vmul.f32 %v1007, %v1012
        %v1014 = vmul.f32 %v1008, %v1012
        %v1015 = vadd.f32 %v978, %v1013
        %v1016 = vadd.f32 %v979, %v1014
        %1017 = vrot.lane.b32.xlu0 %v981, 127
        %v1018 = vpop.permute.xlu0 %1017
        %1019 = vrot.lane.b32.xlu0 %v982, 127
        %v1020 = vpop.permute.xlu0 %1019
        %1023 = vrot.lane.b32.xlu0 %v981, 15
        %v1024 = vpop.permute.xlu0 %1023
        %1025 = vrot.lane.b32.xlu0 %v982, 15
        %v1026 = vpop.permute.xlu0 %1025
        %1029 = vrot.lane.b32.xlu0 %v981, 31
        %v1030 = vpop.permute.xlu0 %1029
        %1031 = vrot.lane.b32.xlu0 %v982, 31
        %v1032 = vpop.permute.xlu0 %1031
        %1035 = vrot.lane.b32.xlu0 %v981, 47
        %v1036 = vpop.permute.xlu0 %1035
        %1037 = vrot.lane.b32.xlu0 %v982, 47
        %v1038 = vpop.permute.xlu0 %1037
        %v1041 = vsel %vm326, %v1018, %v1024
        %v1042 = vsel %vm326, %v1020, %v1026
        %v1043 = vsel %vm329, %v1041, %v1030
        %v1044 = vsel %vm329, %v1042, %v1032
        %v1045 = vsel %vm332, %v1043, %v1036
        %v1046 = vsel %vm332, %v1044, %v1038
        %v1047 = vlaneseq
        %v1048 = vshrl.u32 %v1047, 7
        %v1049 = vsub.s32 3, %v1048
        %v1050 = vrot.slane %v297, %v1049
        %v1051 = vmul.f32 %v1045, %v1050
        %v1052 = vmul.f32 %v1046, %v1050
        %v1053 = vadd.f32 %v1015, %v1051
        %v1054 = vadd.f32 %v1016, %v1052
        %1055 = vrot.lane.b32.xlu0 %v981, 126
        %v1056 = vpop.permute.xlu0 %1055
        %1057 = vrot.lane.b32.xlu0 %v982, 126
        %v1058 = vpop.permute.xlu0 %1057
        %1061 = vrot.lane.b32.xlu0 %v981, 14
        %v1062 = vpop.permute.xlu0 %1061
        %1063 = vrot.lane.b32.xlu0 %v982, 14
        %v1064 = vpop.permute.xlu0 %1063
        %1067 = vrot.lane.b32.xlu0 %v981, 30
        %v1068 = vpop.permute.xlu0 %1067
        %1069 = vrot.lane.b32.xlu0 %v982, 30
        %v1070 = vpop.permute.xlu0 %1069
        %1073 = vrot.lane.b32.xlu0 %v981, 46
        %v1074 = vpop.permute.xlu0 %1073
        %1075 = vrot.lane.b32.xlu0 %v982, 46
        %v1076 = vpop.permute.xlu0 %1075
        %v1079 = vsel %vm326, %v1056, %v1062
        %v1080 = vsel %vm326, %v1058, %v1064
        %v1081 = vsel %vm329, %v1079, %v1068
        %v1082 = vsel %vm329, %v1080, %v1070
        %v1083 = vsel %vm332, %v1081, %v1074
        %v1084 = vsel %vm332, %v1082, %v1076
        %v1085 = vlaneseq
        %v1086 = vshrl.u32 %v1085, 7
        %v1087 = vsub.s32 4, %v1086
        %v1088 = vrot.slane %v297, %v1087
        %v1089 = vmul.f32 %v1083, %v1088
        %v1090 = vmul.f32 %v1084, %v1088
        %v1091 = vadd.f32 %v1053, %v1089
        %v1092 = vadd.f32 %v1054, %v1090
        %v1093 = vld [vmem:[%s980 + $0x1] sm:$0xff]
        %v1094 = vld [vmem:[%s980 + $0x9] sm:$0xff]
        %1097 = vrot.lane.b32.xlu0 %v1093, 16
        %v1098 = vpop.permute.xlu0 %1097
        %1099 = vrot.lane.b32.xlu0 %v1094, 16
        %v1100 = vpop.permute.xlu0 %1099
        %1103 = vrot.lane.b32.xlu0 %v1093, 32
        %v1104 = vpop.permute.xlu0 %1103
        %1105 = vrot.lane.b32.xlu0 %v1094, 32
        %v1106 = vpop.permute.xlu0 %1105
        %1109 = vrot.lane.b32.xlu0 %v1093, 48
        %v1110 = vpop.permute.xlu0 %1109
        %1111 = vrot.lane.b32.xlu0 %v1094, 48
        %v1112 = vpop.permute.xlu0 %1111
        %v1115 = vsel %vm326, %v1093, %v1098
        %v1116 = vsel %vm326, %v1094, %v1100
        %v1117 = vsel %vm329, %v1115, %v1104
        %v1118 = vsel %vm329, %v1116, %v1106
        %v1119 = vsel %vm332, %v1117, %v1110
        %v1120 = vsel %vm332, %v1118, %v1112
        %v1121 = vlaneseq
        %v1122 = vshrl.u32 %v1121, 7
        %v1123 = vsub.s32 5, %v1122
        %v1124 = vrot.slane %v297, %v1123
        %v1125 = vmul.f32 %v1119, %v1124
        %v1126 = vmul.f32 %v1120, %v1124
        %v1127 = vadd.f32 %v1091, %v1125
        %v1128 = vadd.f32 %v1092, %v1126
        %1129 = vrot.lane.b32.xlu0 %v1093, 127
        %v1130 = vpop.permute.xlu0 %1129
        %1131 = vrot.lane.b32.xlu0 %v1094, 127
        %v1132 = vpop.permute.xlu0 %1131
        %1135 = vrot.lane.b32.xlu0 %v1093, 15
        %v1136 = vpop.permute.xlu0 %1135
        %1137 = vrot.lane.b32.xlu0 %v1094, 15
        %v1138 = vpop.permute.xlu0 %1137
        %1141 = vrot.lane.b32.xlu0 %v1093, 31
        %v1142 = vpop.permute.xlu0 %1141
        %1143 = vrot.lane.b32.xlu0 %v1094, 31
        %v1144 = vpop.permute.xlu0 %1143
        %1147 = vrot.lane.b32.xlu0 %v1093, 47
        %v1148 = vpop.permute.xlu0 %1147
        %1149 = vrot.lane.b32.xlu0 %v1094, 47
        %v1150 = vpop.permute.xlu0 %1149
        %v1153 = vsel %vm326, %v1130, %v1136
        %v1154 = vsel %vm326, %v1132, %v1138
        %v1155 = vsel %vm329, %v1153, %v1142
        %v1156 = vsel %vm329, %v1154, %v1144
        %v1157 = vsel %vm332, %v1155, %v1148
        %v1158 = vsel %vm332, %v1156, %v1150
        %v1159 = vlaneseq
        %v1160 = vshrl.u32 %v1159, 7
        %v1161 = vsub.s32 6, %v1160
        %v1162 = vrot.slane %v297, %v1161
        %v1163 = vmul.f32 %v1157, %v1162
        %v1164 = vmul.f32 %v1158, %v1162
        %v1165 = vadd.f32 %v1127, %v1163
        %v1166 = vadd.f32 %v1128, %v1164
        %1167 = vrot.lane.b32.xlu0 %v1093, 126
        %v1168 = vpop.permute.xlu0 %1167
        %1169 = vrot.lane.b32.xlu0 %v1094, 126
        %v1170 = vpop.permute.xlu0 %1169
        %1173 = vrot.lane.b32.xlu0 %v1093, 14
        %v1174 = vpop.permute.xlu0 %1173
        %1175 = vrot.lane.b32.xlu0 %v1094, 14
        %v1176 = vpop.permute.xlu0 %1175
        %1179 = vrot.lane.b32.xlu0 %v1093, 30
        %v1180 = vpop.permute.xlu0 %1179
        %1181 = vrot.lane.b32.xlu0 %v1094, 30
        %v1182 = vpop.permute.xlu0 %1181
        %1185 = vrot.lane.b32.xlu0 %v1093, 46
        %v1186 = vpop.permute.xlu0 %1185
        %1187 = vrot.lane.b32.xlu0 %v1094, 46
        %v1188 = vpop.permute.xlu0 %1187
        %v1191 = vsel %vm326, %v1168, %v1174
        %v1192 = vsel %vm326, %v1170, %v1176
        %v1193 = vsel %vm329, %v1191, %v1180
        %v1194 = vsel %vm329, %v1192, %v1182
        %v1195 = vsel %vm332, %v1193, %v1186
        %v1196 = vsel %vm332, %v1194, %v1188
        %v1197 = vlaneseq
        %v1198 = vshrl.u32 %v1197, 7
        %v1199 = vsub.s32 7, %v1198
        %v1200 = vrot.slane %v297, %v1199
        %v1201 = vmul.f32 %v1195, %v1200
        %v1202 = vmul.f32 %v1196, %v1200
        %v1203 = vadd.f32 %v1165, %v1201
        %v1204 = vadd.f32 %v1166, %v1202
        %v1205 = vld [vmem:[%s980 + $0x2] sm:$0xff]
        %v1206 = vld [vmem:[%s980 + $0xa] sm:$0xff]
        %1209 = vrot.lane.b32.xlu0 %v1205, 16
        %v1210 = vpop.permute.xlu0 %1209
        %1211 = vrot.lane.b32.xlu0 %v1206, 16
        %v1212 = vpop.permute.xlu0 %1211
        %1215 = vrot.lane.b32.xlu0 %v1205, 32
        %v1216 = vpop.permute.xlu0 %1215
        %1217 = vrot.lane.b32.xlu0 %v1206, 32
        %v1218 = vpop.permute.xlu0 %1217
        %1221 = vrot.lane.b32.xlu0 %v1205, 48
        %v1222 = vpop.permute.xlu0 %1221
        %1223 = vrot.lane.b32.xlu0 %v1206, 48
        %v1224 = vpop.permute.xlu0 %1223
        %v1227 = vsel %vm326, %v1205, %v1210
        %v1228 = vsel %vm326, %v1206, %v1212
        %v1229 = vsel %vm329, %v1227, %v1216
        %v1230 = vsel %vm329, %v1228, %v1218
        %v1231 = vsel %vm332, %v1229, %v1222
        %v1232 = vsel %vm332, %v1230, %v1224
        %v1233 = vlaneseq
        %v1234 = vshrl.u32 %v1233, 7
        %v1235 = vsub.s32 0, %v1234
        %v1236 = vrot.slane %v298, %v1235
        %v1237 = vmul.f32 %v1231, %v1236
        %v1238 = vmul.f32 %v1232, %v1236
        %v1239 = vadd.f32 %v1203, %v1237
        %v1240 = vadd.f32 %v1204, %v1238
        %1241 = vrot.lane.b32.xlu0 %v1205, 127
        %v1242 = vpop.permute.xlu0 %1241
        %1243 = vrot.lane.b32.xlu0 %v1206, 127
        %v1244 = vpop.permute.xlu0 %1243
        %1247 = vrot.lane.b32.xlu0 %v1205, 15
        %v1248 = vpop.permute.xlu0 %1247
        %1249 = vrot.lane.b32.xlu0 %v1206, 15
        %v1250 = vpop.permute.xlu0 %1249
        %1253 = vrot.lane.b32.xlu0 %v1205, 31
        %v1254 = vpop.permute.xlu0 %1253
        %1255 = vrot.lane.b32.xlu0 %v1206, 31
        %v1256 = vpop.permute.xlu0 %1255
        %1259 = vrot.lane.b32.xlu0 %v1205, 47
        %v1260 = vpop.permute.xlu0 %1259
        %1261 = vrot.lane.b32.xlu0 %v1206, 47
        %v1262 = vpop.permute.xlu0 %1261
        %v1265 = vsel %vm326, %v1242, %v1248
        %v1266 = vsel %vm326, %v1244, %v1250
        %v1267 = vsel %vm329, %v1265, %v1254
        %v1268 = vsel %vm329, %v1266, %v1256
        %v1269 = vsel %vm332, %v1267, %v1260
        %v1270 = vsel %vm332, %v1268, %v1262
        %v1271 = vlaneseq
        %v1272 = vshrl.u32 %v1271, 7
        %v1273 = vsub.s32 1, %v1272
        %v1274 = vrot.slane %v298, %v1273
        %v1275 = vmul.f32 %v1269, %v1274
        %v1276 = vmul.f32 %v1270, %v1274
        %v1277 = vadd.f32 %v1239, %v1275
        %v1278 = vadd.f32 %v1240, %v1276
        %1279 = vrot.lane.b32.xlu0 %v1205, 126
        %v1280 = vpop.permute.xlu0 %1279
        %1281 = vrot.lane.b32.xlu0 %v1206, 126
        %v1282 = vpop.permute.xlu0 %1281
        %1285 = vrot.lane.b32.xlu0 %v1205, 14
        %v1286 = vpop.permute.xlu0 %1285
        %1287 = vrot.lane.b32.xlu0 %v1206, 14
        %v1288 = vpop.permute.xlu0 %1287
        %1291 = vrot.lane.b32.xlu0 %v1205, 30
        %v1292 = vpop.permute.xlu0 %1291
        %1293 = vrot.lane.b32.xlu0 %v1206, 30
        %v1294 = vpop.permute.xlu0 %1293
        %1297 = vrot.lane.b32.xlu0 %v1205, 46
        %v1298 = vpop.permute.xlu0 %1297
        %1299 = vrot.lane.b32.xlu0 %v1206, 46
        %v1300 = vpop.permute.xlu0 %1299
        %v1303 = vsel %vm326, %v1280, %v1286
        %v1304 = vsel %vm326, %v1282, %v1288
        %v1305 = vsel %vm329, %v1303, %v1292
        %v1306 = vsel %vm329, %v1304, %v1294
        %v1307 = vsel %vm332, %v1305, %v1298
        %v1308 = vsel %vm332, %v1306, %v1300
        %v1309 = vlaneseq
        %v1310 = vshrl.u32 %v1309, 7
        %v1311 = vsub.s32 2, %v1310
        %v1312 = vrot.slane %v298, %v1311
        %v1313 = vmul.f32 %v1307, %v1312
        %v1314 = vmul.f32 %v1308, %v1312
        %v1315 = vadd.f32 %v1277, %v1313
        %v1316 = vadd.f32 %v1278, %v1314
        %s1317 = scalar_lea.vmem [#allocation2], 72
        %v1318 = vld [vmem:[%s1317] sm:$0xff]
        %v1319 = vld [vmem:[%s1317 + $0x8] sm:$0xff]
        %1322 = vrot.lane.b32.xlu0 %v1318, 16
        %v1323 = vpop.permute.xlu0 %1322
        %1324 = vrot.lane.b32.xlu0 %v1319, 16
        %v1325 = vpop.permute.xlu0 %1324
        %1328 = vrot.lane.b32.xlu0 %v1318, 32
        %v1329 = vpop.permute.xlu0 %1328
        %1330 = vrot.lane.b32.xlu0 %v1319, 32
        %v1331 = vpop.permute.xlu0 %1330
        %1334 = vrot.lane.b32.xlu0 %v1318, 48
        %v1335 = vpop.permute.xlu0 %1334
        %1336 = vrot.lane.b32.xlu0 %v1319, 48
        %v1337 = vpop.permute.xlu0 %1336
        %v1340 = vsel %vm326, %v1318, %v1323
        %v1341 = vsel %vm326, %v1319, %v1325
        %v1342 = vsel %vm329, %v1340, %v1329
        %v1343 = vsel %vm329, %v1341, %v1331
        %v1344 = vsel %vm332, %v1342, %v1335
        %v1345 = vsel %vm332, %v1343, %v1337
        %v1346 = vlaneseq
        %v1347 = vshrl.u32 %v1346, 7
        %v1348 = vsub.s32 3, %v1347
        %v1349 = vrot.slane %v298, %v1348
        %v1350 = vmul.f32 %v1344, %v1349
        %v1351 = vmul.f32 %v1345, %v1349
        %v1352 = vadd.f32 %v1315, %v1350
        %v1353 = vadd.f32 %v1316, %v1351
        %1354 = vrot.lane.b32.xlu0 %v1318, 127
        %v1355 = vpop.permute.xlu0 %1354
        %1356 = vrot.lane.b32.xlu0 %v1319, 127
        %v1357 = vpop.permute.xlu0 %1356
        %1360 = vrot.lane.b32.xlu0 %v1318, 15
        %v1361 = vpop.permute.xlu0 %1360
        %1362 = vrot.lane.b32.xlu0 %v1319, 15
        %v1363 = vpop.permute.xlu0 %1362
        %1366 = vrot.lane.b32.xlu0 %v1318, 31
        %v1367 = vpop.permute.xlu0 %1366
        %1368 = vrot.lane.b32.xlu0 %v1319, 31
        %v1369 = vpop.permute.xlu0 %1368
        %1372 = vrot.lane.b32.xlu0 %v1318, 47
        %v1373 = vpop.permute.xlu0 %1372
        %1374 = vrot.lane.b32.xlu0 %v1319, 47
        %v1375 = vpop.permute.xlu0 %1374
        %v1378 = vsel %vm326, %v1355, %v1361
        %v1379 = vsel %vm326, %v1357, %v1363
        %v1380 = vsel %vm329, %v1378, %v1367
        %v1381 = vsel %vm329, %v1379, %v1369
        %v1382 = vsel %vm332, %v1380, %v1373
        %v1383 = vsel %vm332, %v1381, %v1375
        %v1384 = vlaneseq
        %v1385 = vshrl.u32 %v1384, 7
        %v1386 = vsub.s32 4, %v1385
        %v1387 = vrot.slane %v298, %v1386
        %v1388 = vmul.f32 %v1382, %v1387
        %v1389 = vmul.f32 %v1383, %v1387
        %v1390 = vadd.f32 %v1352, %v1388
        %v1391 = vadd.f32 %v1353, %v1389
        %1392 = vrot.lane.b32.xlu0 %v1318, 126
        %v1393 = vpop.permute.xlu0 %1392
        %1394 = vrot.lane.b32.xlu0 %v1319, 126
        %v1395 = vpop.permute.xlu0 %1394
        %1398 = vrot.lane.b32.xlu0 %v1318, 14
        %v1399 = vpop.permute.xlu0 %1398
        %1400 = vrot.lane.b32.xlu0 %v1319, 14
        %v1401 = vpop.permute.xlu0 %1400
        %1404 = vrot.lane.b32.xlu0 %v1318, 30
        %v1405 = vpop.permute.xlu0 %1404
        %1406 = vrot.lane.b32.xlu0 %v1319, 30
        %v1407 = vpop.permute.xlu0 %1406
        %1410 = vrot.lane.b32.xlu0 %v1318, 46
        %v1411 = vpop.permute.xlu0 %1410
        %1412 = vrot.lane.b32.xlu0 %v1319, 46
        %v1413 = vpop.permute.xlu0 %1412
        %v1416 = vsel %vm326, %v1393, %v1399
        %v1417 = vsel %vm326, %v1395, %v1401
        %v1418 = vsel %vm329, %v1416, %v1405
        %v1419 = vsel %vm329, %v1417, %v1407
        %v1420 = vsel %vm332, %v1418, %v1411
        %v1421 = vsel %vm332, %v1419, %v1413
        %v1422 = vlaneseq
        %v1423 = vshrl.u32 %v1422, 7
        %v1424 = vsub.s32 5, %v1423
        %v1425 = vrot.slane %v298, %v1424
        %v1426 = vmul.f32 %v1420, %v1425
        %v1427 = vmul.f32 %v1421, %v1425
        %v1428 = vadd.f32 %v1390, %v1426
        %v1429 = vadd.f32 %v1391, %v1427
        %v1430 = vld [vmem:[%s1317 + $0x1] sm:$0xff]
        %v1431 = vld [vmem:[%s1317 + $0x9] sm:$0xff]
        %1434 = vrot.lane.b32.xlu0 %v1430, 16
        %v1435 = vpop.permute.xlu0 %1434
        %1436 = vrot.lane.b32.xlu0 %v1431, 16
        %v1437 = vpop.permute.xlu0 %1436
        %1440 = vrot.lane.b32.xlu0 %v1430, 32
        %v1441 = vpop.permute.xlu0 %1440
        %1442 = vrot.lane.b32.xlu0 %v1431, 32
        %v1443 = vpop.permute.xlu0 %1442
        %1446 = vrot.lane.b32.xlu0 %v1430, 48
        %v1447 = vpop.permute.xlu0 %1446
        %1448 = vrot.lane.b32.xlu0 %v1431, 48
        %v1449 = vpop.permute.xlu0 %1448
        %v1452 = vsel %vm326, %v1430, %v1435
        %v1453 = vsel %vm326, %v1431, %v1437
        %v1454 = vsel %vm329, %v1452, %v1441
        %v1455 = vsel %vm329, %v1453, %v1443
        %v1456 = vsel %vm332, %v1454, %v1447
        %v1457 = vsel %vm332, %v1455, %v1449
        %v1458 = vlaneseq
        %v1459 = vshrl.u32 %v1458, 7
        %v1460 = vsub.s32 6, %v1459
        %v1461 = vrot.slane %v298, %v1460
        %v1462 = vmul.f32 %v1456, %v1461
        %v1463 = vmul.f32 %v1457, %v1461
        %v1464 = vadd.f32 %v1428, %v1462
        %v1465 = vadd.f32 %v1429, %v1463
        %1466 = vrot.lane.b32.xlu0 %v1430, 127
        %v1467 = vpop.permute.xlu0 %1466
        %1468 = vrot.lane.b32.xlu0 %v1431, 127
        %v1469 = vpop.permute.xlu0 %1468
        %1472 = vrot.lane.b32.xlu0 %v1430, 15
        %v1473 = vpop.permute.xlu0 %1472
        %1474 = vrot.lane.b32.xlu0 %v1431, 15
        %v1475 = vpop.permute.xlu0 %1474
        %1478 = vrot.lane.b32.xlu0 %v1430, 31
        %v1479 = vpop.permute.xlu0 %1478
        %1480 = vrot.lane.b32.xlu0 %v1431, 31
        %v1481 = vpop.permute.xlu0 %1480
        %1484 = vrot.lane.b32.xlu0 %v1430, 47
        %v1485 = vpop.permute.xlu0 %1484
        %1486 = vrot.lane.b32.xlu0 %v1431, 47
        %v1487 = vpop.permute.xlu0 %1486
        %v1490 = vsel %vm326, %v1467, %v1473
        %v1491 = vsel %vm326, %v1469, %v1475
        %v1492 = vsel %vm329, %v1490, %v1479
        %v1493 = vsel %vm329, %v1491, %v1481
        %v1494 = vsel %vm332, %v1492, %v1485
        %v1495 = vsel %vm332, %v1493, %v1487
        %v1496 = vlaneseq
        %v1497 = vshrl.u32 %v1496, 7
        %v1498 = vsub.s32 7, %v1497
        %v1499 = vrot.slane %v298, %v1498
        %v1500 = vmul.f32 %v1494, %v1499
        %v1501 = vmul.f32 %v1495, %v1499
        %v1502 = vadd.f32 %v1464, %v1500
        %v1503 = vadd.f32 %v1465, %v1501
        %1504 = vrot.lane.b32.xlu0 %v1430, 126
        %v1505 = vpop.permute.xlu0 %1504
        %1506 = vrot.lane.b32.xlu0 %v1431, 126
        %v1507 = vpop.permute.xlu0 %1506
        %1510 = vrot.lane.b32.xlu0 %v1430, 14
        %v1511 = vpop.permute.xlu0 %1510
        %1512 = vrot.lane.b32.xlu0 %v1431, 14
        %v1513 = vpop.permute.xlu0 %1512
        %1516 = vrot.lane.b32.xlu0 %v1430, 30
        %v1517 = vpop.permute.xlu0 %1516
        %1518 = vrot.lane.b32.xlu0 %v1431, 30
        %v1519 = vpop.permute.xlu0 %1518
        %1522 = vrot.lane.b32.xlu0 %v1430, 46
        %v1523 = vpop.permute.xlu0 %1522
        %1524 = vrot.lane.b32.xlu0 %v1431, 46
        %v1525 = vpop.permute.xlu0 %1524
        %v1528 = vsel %vm326, %v1505, %v1511
        %v1529 = vsel %vm326, %v1507, %v1513
        %v1530 = vsel %vm329, %v1528, %v1517
        %v1531 = vsel %vm329, %v1529, %v1519
        %v1532 = vsel %vm332, %v1530, %v1523
        %v1533 = vsel %vm332, %v1531, %v1525
        %v1534 = vlaneseq
        %v1535 = vshrl.u32 %v1534, 7
        %v1536 = vsub.s32 0, %v1535
        %v1537 = vrot.slane %v299, %v1536
        %v1538 = vmul.f32 %v1532, %v1537
        %v1539 = vmul.f32 %v1533, %v1537
        %v1540 = vadd.f32 %v1502, %v1538
        %v1541 = vadd.f32 %v1503, %v1539
        %v1542 = vld [vmem:[%s1317 + $0x2] sm:$0xff]
        %v1543 = vld [vmem:[%s1317 + $0xa] sm:$0xff]
        %1546 = vrot.lane.b32.xlu0 %v1542, 16
        %v1547 = vpop.permute.xlu0 %1546
        %1548 = vrot.lane.b32.xlu0 %v1543, 16
        %v1549 = vpop.permute.xlu0 %1548
        %1552 = vrot.lane.b32.xlu0 %v1542, 32
        %v1553 = vpop.permute.xlu0 %1552
        %1554 = vrot.lane.b32.xlu0 %v1543, 32
        %v1555 = vpop.permute.xlu0 %1554
        %1558 = vrot.lane.b32.xlu0 %v1542, 48
        %v1559 = vpop.permute.xlu0 %1558
        %1560 = vrot.lane.b32.xlu0 %v1543, 48
        %v1561 = vpop.permute.xlu0 %1560
        %v1564 = vsel %vm326, %v1542, %v1547
        %v1565 = vsel %vm326, %v1543, %v1549
        %v1566 = vsel %vm329, %v1564, %v1553
        %v1567 = vsel %vm329, %v1565, %v1555
        %v1568 = vsel %vm332, %v1566, %v1559
        %v1569 = vsel %vm332, %v1567, %v1561
        %v1570 = vlaneseq
        %v1571 = vshrl.u32 %v1570, 7
        %v1572 = vsub.s32 1, %v1571
        %v1573 = vrot.slane %v299, %v1572
        %v1574 = vmul.f32 %v1568, %v1573
        %v1575 = vmul.f32 %v1569, %v1573
        %v1576 = vadd.f32 %v1540, %v1574
        %v1577 = vadd.f32 %v1541, %v1575
        %1578 = vrot.lane.b32.xlu0 %v1542, 127
        %v1579 = vpop.permute.xlu0 %1578
        %1580 = vrot.lane.b32.xlu0 %v1543, 127
        %v1581 = vpop.permute.xlu0 %1580
        %1584 = vrot.lane.b32.xlu0 %v1542, 15
        %v1585 = vpop.permute.xlu0 %1584
        %1586 = vrot.lane.b32.xlu0 %v1543, 15
        %v1587 = vpop.permute.xlu0 %1586
        %1590 = vrot.lane.b32.xlu0 %v1542, 31
        %v1591 = vpop.permute.xlu0 %1590
        %1592 = vrot.lane.b32.xlu0 %v1543, 31
        %v1593 = vpop.permute.xlu0 %1592
        %1596 = vrot.lane.b32.xlu0 %v1542, 47
        %v1597 = vpop.permute.xlu0 %1596
        %1598 = vrot.lane.b32.xlu0 %v1543, 47
        %v1599 = vpop.permute.xlu0 %1598
        %v1602 = vsel %vm326, %v1579, %v1585
        %v1603 = vsel %vm326, %v1581, %v1587
        %v1604 = vsel %vm329, %v1602, %v1591
        %v1605 = vsel %vm329, %v1603, %v1593
        %v1606 = vsel %vm332, %v1604, %v1597
        %v1607 = vsel %vm332, %v1605, %v1599
        %v1608 = vlaneseq
        %v1609 = vshrl.u32 %v1608, 7
        %v1610 = vsub.s32 2, %v1609
        %v1611 = vrot.slane %v299, %v1610
        %v1612 = vmul.f32 %v1606, %v1611
        %v1613 = vmul.f32 %v1607, %v1611
        %v1614 = vadd.f32 %v1576, %v1612
        %v1615 = vadd.f32 %v1577, %v1613
        %1616 = vrot.lane.b32.xlu0 %v1542, 126
        %v1617 = vpop.permute.xlu0 %1616
        %1618 = vrot.lane.b32.xlu0 %v1543, 126
        %v1619 = vpop.permute.xlu0 %1618
        %1622 = vrot.lane.b32.xlu0 %v1542, 14
        %v1623 = vpop.permute.xlu0 %1622
        %1624 = vrot.lane.b32.xlu0 %v1543, 14
        %v1625 = vpop.permute.xlu0 %1624
        %1628 = vrot.lane.b32.xlu0 %v1542, 30
        %v1629 = vpop.permute.xlu0 %1628
        %1630 = vrot.lane.b32.xlu0 %v1543, 30
        %v1631 = vpop.permute.xlu0 %1630
        %1634 = vrot.lane.b32.xlu0 %v1542, 46
        %v1635 = vpop.permute.xlu0 %1634
        %1636 = vrot.lane.b32.xlu0 %v1543, 46
        %v1637 = vpop.permute.xlu0 %1636
        %v1640 = vsel %vm326, %v1617, %v1623
        %v1641 = vsel %vm326, %v1619, %v1625
        %v1642 = vsel %vm329, %v1640, %v1629
        %v1643 = vsel %vm329, %v1641, %v1631
        %v1644 = vsel %vm332, %v1642, %v1635
        %v1645 = vsel %vm332, %v1643, %v1637
        %v1646 = vlaneseq
        %v1647 = vshrl.u32 %v1646, 7
        %v1648 = vsub.s32 3, %v1647
        %v1649 = vrot.slane %v299, %v1648
        %v1650 = vmul.f32 %v1644, %v1649
        %v1651 = vmul.f32 %v1645, %v1649
        %v1652 = vadd.f32 %v1614, %v1650
        %v1653 = vadd.f32 %v1615, %v1651
        %v1654 = vmax.f32 %v1652, 0.0
        %v1655 = vmax.f32 %v1653, 0.0
        %v1656 = vld [vmem:[%s2] sm:$0xff]
        %v1657 = vld [vmem:[%s2 + $0x8] sm:$0xff]
        %v1658 = vld [vmem:[%s2 + $0x10] sm:$0xff]
        %v1659 = vld [vmem:[%s2 + $0x18] sm:$0xff]
        %v1661 = vsel %vm326, %v1656, 0
        %v1664 = vsel %vm326, %v1657, 0
        %v1667 = vsel %vm326, %v1658, 0
        %v1670 = vsel %vm326, %v1659, 0
        %1672 = vmatprep.subr.mxu0 0.0
        %1673 = vmatpush1.msra.mxu0 %v1654
        %1674 = vmatprep.subr.mxu0 0.0
        %1675 = vmatpush1.msra.mxu0 %v1655
        %1676 = vmatprep.subr.mxu0 0.0
        %1677 = vmatpush1.msra.mxu0 0.0
        %1678 = vmatprep.subr.mxu0 0.0
        %1679 = vmatpush1.msra.mxu0 0.0
        %1680 = vmatprep.subr.mxu0 0.0
        %1681 = vmatpush1.msra.mxu0 0.0
        %1682 = vmatprep.subr.mxu0 0.0
        %1683 = vmatpush1.msra.mxu0 0.0
        %1684 = vmatprep.subr.mxu0 0.0
        %1685 = vmatpush1.msra.mxu0 0.0
        %1686 = vmatprep.subr.mxu0 0.0
        %1687 = vmatpush1.msra.mxu0 0.0
        %1688 = vmatprep.subr.mxu0 0.0
        %1689 = vmatpush1.msra.mxu0 0.0
        %1690 = vmatprep.subr.mxu0 0.0
        %1691 = vmatpush1.msra.mxu0 0.0
        %1692 = vmatprep.subr.mxu0 0.0
        %1693 = vmatpush1.msra.mxu0 0.0
        %1694 = vmatprep.subr.mxu0 0.0
        %1695 = vmatpush1.msra.mxu0 0.0
        %1696 = vmatprep.subr.mxu0 0.0
        %1697 = vmatpush1.msra.mxu0 0.0
        %1698 = vmatprep.subr.mxu0 0.0
        %1699 = vmatpush1.msra.mxu0 0.0
        %1700 = vmatprep.subr.mxu0 0.0
        %1701 = vmatpush1.msra.mxu0 0.0
        %1702 = vmatprep.subr.mxu0 0.0
        %1703 = vmatpush1.msra.mxu0 0.0
        %1704 = vmatprep.subr.mxu0 0.0
        %1705 = vmatpush1.msra.mxu0 0.0
        %1706 = vmatprep.subr.mxu0 0.0
        %1707 = vmatpush1.msra.mxu0 0.0
        %1708 = vmatprep.subr.mxu0 0.0
        %1709 = vmatpush1.msra.mxu0 0.0
        %1710 = vmatprep.subr.mxu0 0.0
        %1711 = vmatpush1.msra.mxu0 0.0
        %1712 = vmatprep.subr.mxu0 0.0
        %1713 = vmatpush1.msra.mxu0 0.0
        %1714 = vmatprep.subr.mxu0 0.0
        %1715 = vmatpush1.msra.mxu0 0.0
        %1716 = vmatprep.subr.mxu0 0.0
        %1717 = vmatpush1.msra.mxu0 0.0
        %1718 = vmatprep.subr.mxu0 0.0
        %1719 = vmatpush1.msra.mxu0 0.0
        %1720 = vmatprep.subr.mxu0 0.0
        %1721 = vmatpush1.msra.mxu0 0.0
        %1722 = vmatprep.subr.mxu0 0.0
        %1723 = vmatpush1.msra.mxu0 0.0
        %1724 = vmatprep.subr.mxu0 0.0
        %1725 = vmatpush1.msra.mxu0 0.0
        %1726 = vmatprep.subr.mxu0 0.0
        %1727 = vmatpush1.msra.mxu0 0.0
        %1728 = vmatprep.subr.mxu0 0.0
        %1729 = vmatpush1.msra.mxu0 0.0
        %1730 = vmatprep.subr.mxu0 0.0
        %1731 = vmatpush1.msra.mxu0 0.0
        %1732 = vmatprep.subr.mxu0 0.0
        %1733 = vmatpush1.msra.mxu0 0.0
        %1734 = vmatprep.subr.mxu0 0.0
        %1735 = vmatpush1.msra.mxu0 0.0
        %1736 = vmatprep.mubr.f32.mxu0 0.0
        %1737 = vmatmul.mubr.f32.gmra.mrb[0].mxu0 %v1661
        %v1738 = vpop.f32.mrb[0].mxu0
        %v1739 = vadd.f32 0.0, %v1738
        %v1740 = vpop.f32.mrb[0].mxu0
        %1741 = vmatprep.mubr.f32.mxu0 0.0
        %1742 = vmatmul.mubr.f32.gmra.mrb[0].mxu0 %v1664
        %v1743 = vpop.f32.mrb[0].mxu0
        %v1744 = vadd.f32 0.0, %v1743
        %v1745 = vpop.f32.mrb[0].mxu0
        %1746 = vmatprep.mubr.f32.mxu0 0.0
        %1747 = vmatmul.mubr.f32.gmra.mrb[0].mxu0 %v1667
        %v1748 = vpop.f32.mrb[0].mxu0
        %v1749 = vadd.f32 0.0, %v1748
        %v1750 = vpop.f32.mrb[0].mxu0
        %1751 = vmatprep.mubr.f32.mxu0 0.0
        %1752 = vmatmul.mubr.f32.gmra.mrb[0].mxu0 %v1670
        %v1753 = vpop.f32.mrb[0].mxu0
        %v1754 = vadd.f32 0.0, %v1753
        %v1755 = vpop.f32.mrb[0].mxu0
        %1756 = vdwg.mxu0
        %v1757 = vld [vmem:[#allocation3] sm:$0xff]
        %v1758 = vld [vmem:[#allocation3 + $0x8] sm:$0xff]
        %v1759 = vld [vmem:[#allocation3 + $0x10] sm:$0xff]
        %v1760 = vld [vmem:[#allocation3 + $0x18] sm:$0xff]
        %v1761 = vld [vmem:[#allocation3 + $0x20] sm:$0xff]
        %v1762 = vld [vmem:[#allocation3 + $0x28] sm:$0xff]
        %v1763 = vld [vmem:[#allocation3 + $0x30] sm:$0xff]
        %v1764 = vld [vmem:[#allocation3 + $0x38] sm:$0xff]
        %vm1765 = vcmask 523264
        %v1767 = vsel %vm1765, %v1739, 0
        %v1770 = vsel %vm1765, %v1744, 0
        %v1773 = vsel %vm1765, %v1749, 0
        %v1776 = vsel %vm1765, %v1754, 0
        %1778 = vmatprep.subr.mxu0 0.0
        %1779 = vmatpush1.msra.mxu0 %v1757
        %1780 = vmatprep.subr.mxu0 0.0
        %1781 = vmatpush1.msra.mxu0 %v1758
        %1782 = vmatprep.subr.mxu0 0.0
        %1783 = vmatpush1.msra.mxu0 %v1759
        %1784 = vmatprep.subr.mxu0 0.0
        %1785 = vmatpush1.msra.mxu0 %v1760
        %1786 = vmatprep.subr.mxu0 0.0
        %1787 = vmatpush1.msra.mxu0 %v1761
        %1788 = vmatprep.subr.mxu0 0.0
        %1789 = vmatpush1.msra.mxu0 %v1762
        %1790 = vmatprep.subr.mxu0 0.0
        %1791 = vmatpush1.msra.mxu0 %v1763
        %1792 = vmatprep.subr.mxu0 0.0
        %1793 = vmatpush1.msra.mxu0 %v1764
        %1794 = vmatprep.subr.mxu0 0.0
        %1795 = vmatpush1.msra.mxu0 0.0
        %1796 = vmatprep.subr.mxu0 0.0
        %1797 = vmatpush1.msra.mxu0 0.0
        %1798 = vmatprep.subr.mxu0 0.0
        %1799 = vmatpush1.msra.mxu0 0.0
        %1800 = vmatprep.subr.mxu0 0.0
        %1801 = vmatpush1.msra.mxu0 0.0
        %1802 = vmatprep.subr.mxu0 0.0
        %1803 = vmatpush1.msra.mxu0 0.0
        %1804 = vmatprep.subr.mxu0 0.0
        %1805 = vmatpush1.msra.mxu0 0.0
        %1806 = vmatprep.subr.mxu0 0.0
        %1807 = vmatpush1.msra.mxu0 0.0
        %1808 = vmatprep.subr.mxu0 0.0
        %1809 = vmatpush1.msra.mxu0 0.0
        %1810 = vmatprep.subr.mxu0 0.0
        %1811 = vmatpush1.msra.mxu0 0.0
        %1812 = vmatprep.subr.mxu0 0.0
        %1813 = vmatpush1.msra.mxu0 0.0
        %1814 = vmatprep.subr.mxu0 0.0
        %1815 = vmatpush1.msra.mxu0 0.0
        %1816 = vmatprep.subr.mxu0 0.0
        %1817 = vmatpush1.msra.mxu0 0.0
        %1818 = vmatprep.subr.mxu0 0.0
        %1819 = vmatpush1.msra.mxu0 0.0
        %1820 = vmatprep.subr.mxu0 0.0
        %1821 = vmatpush1.msra.mxu0 0.0
        %1822 = vmatprep.subr.mxu0 0.0
        %1823 = vmatpush1.msra.mxu0 0.0
        %1824 = vmatprep.subr.mxu0 0.0
        %1825 = vmatpush1.msra.mxu0 0.0
        %1826 = vmatprep.subr.mxu0 0.0
        %1827 = vmatpush1.msra.mxu0 0.0
        %1828 = vmatprep.subr.mxu0 0.0
        %1829 = vmatpush1.msra.mxu0 0.0
        %1830 = vmatprep.subr.mxu0 0.0
        %1831 = vmatpush1.msra.mxu0 0.0
        %1832 = vmatprep.subr.mxu0 0.0
        %1833 = vmatpush1.msra.mxu0 0.0
        %1834 = vmatprep.subr.mxu0 0.0
        %1835 = vmatpush1.msra.mxu0 0.0
        %1836 = vmatprep.subr.mxu0 0.0
        %1837 = vmatpush1.msra.mxu0 0.0
        %1838 = vmatprep.subr.mxu0 0.0
        %1839 = vmatpush1.msra.mxu0 0.0
        %1840 = vmatprep.subr.mxu0 0.0
        %1841 = vmatpush1.msra.mxu0 0.0
        %1842 = vmatprep.mubr.f32.mxu0 0.0
        %1843 = vmatmul.mubr.f32.gmra.mrb[0].mxu0 %v1767
        %v1844 = vpop.f32.mrb[0].mxu0
        %v1845 = vadd.f32 0.0, %v1844
        %v1846 = vpop.f32.mrb[0].mxu0
        %1847 = vmatprep.mubr.f32.mxu0 0.0
        %1848 = vmatmul.mubr.f32.gmra.mrb[0].mxu0 %v1770
        %v1849 = vpop.f32.mrb[0].mxu0
        %v1850 = vadd.f32 0.0, %v1849
        %v1851 = vpop.f32.mrb[0].mxu0
        %1852 = vmatprep.mubr.f32.mxu0 0.0
        %1853 = vmatmul.mubr.f32.gmra.mrb[0].mxu0 %v1773
        %v1854 = vpop.f32.mrb[0].mxu0
        %v1855 = vadd.f32 0.0, %v1854
        %v1856 = vpop.f32.mrb[0].mxu0
        %1857 = vmatprep.mubr.f32.mxu0 0.0
        %1858 = vmatmul.mubr.f32.gmra.mrb[0].mxu0 %v1776
        %v1859 = vpop.f32.mrb[0].mxu0
        %v1860 = vadd.f32 0.0, %v1859
        %v1861 = vpop.f32.mrb[0].mxu0
        %1862 = vdwg.mxu0
        %1863 = vst [vmem:[%s230] sm:$0xff] %v1845
        %1864 = vst [vmem:[%s230 + $0x8] sm:$0xff] %v1850
        %1865 = vst [vmem:[%s230 + $0x10] sm:$0xff] %v1855
        %1866 = vst [vmem:[%s230 + $0x18] sm:$0xff] %v1860
        %s1867 = sand.u32 %s119, 1
        %s1868 = scalar_lea.sflag [#allocation5], %s1867
        %s1869 = sand.u32 %s119, 1
        %s1870 = smul.addr %s1869, 32
        %s1871 = scalar_lea.vmem [#allocation8], %s1870
        // Predicated region
        $region45: #{tpu_custom_call.1} parent=35 // pred_check
          %p1872 = pneg %p129
        $region46: #{tpu_custom_call.1} parent=35 // pred_check_branch
          %1874 = sbr.rel (%p1872) target = $region48
        $region47: #{tpu_custom_call.1} parent=35 // pred_region
          %s1875 = smul.u32 4, %s22
          %s1877 = ssub.s32 512, 512
          %1878 = vsyncadd %s1868, %s1877
          %s1879 = smul.addr %s1875, 128
          %s1880 = scalar_lea.hbm %s4, %s1879
          %s1881 = sshll.u32 %s1871, 4
          %s1882 = int_to_ptr.vmem [resolvable:$true] %s1881
          %1887 = dma.vmem_to_hbm [thread:$0]  %s1882, 512, %s1880, %s1868, 128, 128, 8
        $region48: #{tpu_custom_call.1} parent=35 // pred_fallthru
          _
      $region36: #{tpu_custom_call.1} parent=5 // pred_fallthru
        _
      %p1888 = scmp.le.s32.totalorder 2, %s17
      // Predicated region
      $region49: #{tpu_custom_call.1} parent=5 // pred_check
        %p1889 = pneg %p1888
      $region50: #{tpu_custom_call.1} parent=5 // pred_check_branch
        %1891 = sbr.rel (%p1889) target = $region52
      $region51: #{tpu_custom_call.1} parent=5 // pred_region
        %s1892 = ssub.s32 %s17, 2
        // Predicated region
        $region53: #{tpu_custom_call.1} parent=51 // pred_check
          %p1893 = pneg %p135
        $region54: #{tpu_custom_call.1} parent=51 // pred_check_branch
          %1895 = sbr.rel (%p1893) target = $region56
        $region55: #{tpu_custom_call.1} parent=51 // pred_region
          %s1896 = sand.u32 %s120, 1
          %s1897 = scalar_lea.sflag [#allocation5], %s1896
          %s1898 = sand.u32 %s120, 1
          %s1899 = smul.addr %s1898, 32
          %s1900 = scalar_lea.vmem [#allocation8], %s1899
          %1901 = dma.done %s1897, 512
        $region56: #{tpu_custom_call.1} parent=51 // pred_fallthru
          _
      $region52: #{tpu_custom_call.1} parent=5 // pred_fallthru
        _
    $region6: #{tpu_custom_call.1} parent=1 // loop_footer
      %s21 = sadd.s32 1, %s17
    $region7: #{tpu_custom_call.1} parent=1 // loop_footer_branch
      %16 = sbr.rel target = $region3
    $region8: #{tpu_custom_call.1} parent=1 // loop_exit
      _
    %1902 = vsyncpa [#allocation4], 1
    %s1903 = scalar_lea.sflag [#allocation4], 1
    %1904 = vsyncpa %s1903, 1
    %1905 = vsyncpa [#allocation7], 1
    %s1906 = scalar_lea.sflag [#allocation7], 1
    %1907 = vsyncpa %s1906, 1
    %1908 = vsyncpa [#allocation5], 1
    %s1909 = scalar_lea.sflag [#allocation5], 1
    %1910 = vsyncpa %s1909, 1

</llo_original>
